<compile_context>
chip_gen: v6e
topology: v6e:2x2x1
jax: 0.10.0
libtpu: 0.0.40
codegen_flags: <defaults>
</compile_context>

<pallas_src>
import jax
import jax.numpy as jnp
from jax.experimental import pallas as pl
from jax.experimental.pallas import tpu as pltpu

# ----------------------------- configuration --------------------------------
VOCAB_SIZE = 128     # LSTM input_size (lane-aligned small size)
HIDDEN_DIM = 64      # H  (2H = 128 -> gate groups are exactly vreg-aligned)
BATCH      = 256
BLOCK_B    = 256     # == BATCH -> one grid step (overhead-dominated kernel)


# ------------------------------- kernel --------------------------------------
def _fused_bidir_cell(x, w_t, b, hidden_dim):
    """One fused bidirectional LSTM cell step (T=1, h0 = c0 = 0).

    x:   (Bb, D_in) float32 activations (cast to bf16 only to feed the MXU)
    w_t: (D_in, 6H) bfloat16, columns [i_f|i_b, g_f|g_b, o_f|o_b] (f dropped)
    b:   (1, 6H)    float32 (b_ih + b_hh, same column layout)
    returns (Bb, 2H) float32 hidden state already in [h_fwd | h_bwd] order.
    """
    gates = jnp.dot(x.astype(jnp.bfloat16), w_t,
                    preferred_element_type=jnp.float32) + b
    d = 2 * hidden_dim
    i = jax.nn.sigmoid(gates[:, 0 * d:1 * d])
    g = jnp.tanh(gates[:, 1 * d:2 * d])
    o = jax.nn.sigmoid(gates[:, 2 * d:3 * d])
    return o * jnp.tanh(i * g)          # c = i*g because c_prev == 0


def _stacked_birnn_kernel(x_ref, w0_ref, b0_ref, w1_ref, b1_ref,
                          wfc_ref, bfc_ref, out_ref):
    H = HIDDEN_DIM
    x = x_ref[...]                                             # (Bb, V) f32

    # layer 0: both directions in one (V, 6H) bf16 matmul, f32 accumulate
    h0 = _fused_bidir_cell(x, w0_ref[...], b0_ref[...], H)     # (Bb, 2H)
    # layer 1: both directions in one (2H, 6H) bf16 matmul
    h1 = _fused_bidir_cell(h0, w1_ref[...], b1_ref[...], H)    # (Bb, 2H)

    # AdaptiveMaxPool1d(1) over T=1 is the identity.
    # fc as VPU multiply + lane reduce; then a (Bb,1)->(1,Bb) XLU transpose
    # so the store is one lane-dense (1, Bb) row (unmasked vst).
    s = jnp.sum(h1 * wfc_ref[...], axis=-1, keepdims=True) + bfc_ref[...]
    out_ref[...] = jnp.transpose(s)                            # (1, Bb)


def stacked_birnn_forward(x, params, *, block_b=BLOCK_B):
    """x: (B, VOCAB_SIZE) float32 -> (B, 1) float32."""
    B, V = x.shape
    H = HIDDEN_DIM
    # Gate slices / [fwd|bwd] lane ordering rely on 2H being lane-aligned.
    assert (2 * H) % 128 == 0, "2*HIDDEN_DIM must be a multiple of 128"
    block_b = min(block_b, B)
    assert B % block_b == 0, (B, block_b)
    n_blocks = B // block_b

    def full(shape):
        # whole-array block, resident in VMEM for every grid step
        return pl.BlockSpec(shape, lambda i: (0, 0))

    out = pl.pallas_call(
        _stacked_birnn_kernel,
        out_shape=jax.ShapeDtypeStruct((n_blocks, block_b), jnp.float32),
        grid=(n_blocks,),
        in_specs=[
            pl.BlockSpec((block_b, V), lambda i: (i, 0)),   # x batch tile
            full((V, 6 * H)), full((1, 6 * H)),             # layer-0 fused
            full((2 * H, 6 * H)), full((1, 6 * H)),         # layer-1 fused
            full((1, 2 * H)), full((1, 1)),                 # fc row + bias
        ],
        out_specs=pl.BlockSpec((1, block_b), lambda i: (i, 0)),  # lane-dense row
        compiler_params=pltpu.CompilerParams(
            dimension_semantics=(
                ("arbitrary",) if n_blocks == 1 else ("parallel",))),
    )(x, params["w0"], params["b0"], params["w1"], params["b1"],
      params["wfc"], params["bfc"])

    # (n_blocks, block_b) slab -> (B, 1); row-major, so this is free.
    return out.reshape(B, 1)


# --------------------------- parameter handling ------------------------------
def init_raw_params(key, vocab_size, hidden_dim):
    """PyTorch nn.LSTM / nn.Linear layout with uniform(-1/sqrt(H), 1/sqrt(H))."""
    H = hidden_dim
    bound = 1.0 / float(H) ** 0.5
    keys = iter(jax.random.split(key, 18))

    def u(shape, b):
        return jax.random.uniform(next(keys), shape, jnp.float32, -b, b)

    def direction(d_in):
        return dict(w_ih=u((4 * H, d_in), bound),   # PyTorch (i,f,g,o) rows
                    w_hh=u((4 * H, H), bound),
                    b_ih=u((4 * H,), bound),
                    b_hh=u((4 * H,), bound))

    raw = dict(l0f=direction(vocab_size), l0b=direction(vocab_size),
               l1f=direction(2 * H),      l1b=direction(2 * H))
    fc_bound = 1.0 / float(2 * H) ** 0.5
    raw["fc_w"] = u((1, 2 * H), fc_bound)
    raw["fc_b"] = u((1,), fc_bound)
    return raw


def pack_params(raw, hidden_dim):
    """Pack PyTorch-layout params into the fused kernel layout.

    Per layer: W (D_in, 6H) bf16, b (1, 6H) f32 with gate-kind-major columns
    [i_fwd | i_bwd | g_fwd | g_bwd | o_fwd | o_bwd].  PyTorch gate order is
    (i, f, g, o); weight_ih is (4H, D_in); bias = b_ih + b_hh.  The forget
    gate (c0 == 0) and W_hh (h0 == 0) are dropped.  Real nn.LSTM checkpoints
    must be packed exactly this way.
    """
    H = hidden_dim

    def gate_cols(d):
        w_t = d["w_ih"].T                           # (D_in, 4H)
        b = (d["b_ih"] + d["b_hh"])[None, :]        # (1, 4H)
        sl = lambda a, k: a[:, k * H:(k + 1) * H]
        # PyTorch gate order: 0=i, 1=f (dropped), 2=g, 3=o
        return ((sl(w_t, 0), sl(w_t, 2), sl(w_t, 3)),
                (sl(b, 0), sl(b, 2), sl(b, 3)))

    def fuse(fwd, bwd):
        (wi_f, wg_f, wo_f), (bi_f, bg_f, bo_f) = gate_cols(fwd)
        (wi_b, wg_b, wo_b), (bi_b, bg_b, bo_b) = gate_cols(bwd)
        # bf16 MXU operands (single-pass MXU, half the weight VMEM/HBM bytes);
        # accumulation and all elementwise math stay f32.
        w = jnp.concatenate([wi_f, wi_b, wg_f, wg_b, wo_f, wo_b],
                            axis=1).astype(jnp.bfloat16)
        b = jnp.concatenate([bi_f, bi_b, bg_f, bg_b, bo_f, bo_b], axis=1)
        return w, b

    w0, b0 = fuse(raw["l0f"], raw["l0b"])
    w1, b1 = fuse(raw["l1f"], raw["l1b"])
    return dict(w0=w0, b0=b0, w1=w1, b1=b1,
                wfc=raw["fc_w"],                    # (1, 2H) f32 broadcast row
                bfc=raw["fc_b"][None, :])           # (1, 1)  f32


# ------------------------- pure-JAX reference check --------------------------
def reference_forward(x, raw, hidden_dim):
    """Full LSTM-cell math (f-gate, W_hh) with zero initial state, T=1."""
    H = hidden_dim
    hi = jax.lax.Precision.HIGHEST

    def cell(xx, d):
        B = xx.shape[0]
        h_prev = jnp.zeros((B, H), jnp.float32)
        c_prev = jnp.zeros((B, H), jnp.float32)
        g = (jnp.dot(xx, d["w_ih"].T, precision=hi)
             + jnp.dot(h_prev, d["w_hh"].T, precision=hi)
             + d["b_ih"] + d["b_hh"])
        i = jax.nn.sigmoid(g[:, 0:H])
        f = jax.nn.sigmoid(g[:, H:2 * H])
        gg = jnp.tanh(g[:, 2 * H:3 * H])
        o = jax.nn.sigmoid(g[:, 3 * H:4 * H])
        c = f * c_prev + i * gg
        return o * jnp.tanh(c)

    h0 = jnp.concatenate([cell(x, raw["l0f"]), cell(x, raw["l0b"])], axis=-1)
    h1 = jnp.concatenate([cell(h0, raw["l1f"]), cell(h0, raw["l1b"])], axis=-1)
    # AdaptiveMaxPool1d(1) over T=1 -> identity
    return jnp.dot(h1, raw["fc_w"].T, precision=hi) + raw["fc_b"]


if __name__ == "__main__":
    key = jax.random.PRNGKey(0)
    kx, kp = jax.random.split(key)

    x = jax.random.normal(kx, (BATCH, VOCAB_SIZE), jnp.float32)
    raw = init_raw_params(kp, VOCAB_SIZE, HIDDEN_DIM)
    params = pack_params(raw, HIDDEN_DIM)

    out = stacked_birnn_forward(x, params)
    out = jax.block_until_ready(out)

    ref = reference_forward(x, raw, HIDDEN_DIM)
    assert out.shape == (BATCH, 1), out.shape
    # Tolerance sized for bf16 MXU operands (f32 accumulation) vs the
    # HIGHEST-precision f32 XLA reference.
    err = float(jnp.max(jnp.abs(out - ref)))
    assert jnp.allclose(out, ref, atol=4e-2, rtol=4e-2), f"max abs err {err}"

    print("KERNEL_OK")
</pallas_src>

<mosaic_0001>
module attributes {stable_mosaic.version = 11 : i64} {
  func.func @_stacked_birnn_kernel(%arg0: i32, %arg1: memref<256x128xf32, #tpu.memory_space<vmem>>, %arg2: memref<128x384xbf16, #tpu.memory_space<vmem>>, %arg3: memref<1x384xf32, #tpu.memory_space<vmem>>, %arg4: memref<128x384xbf16, #tpu.memory_space<vmem>>, %arg5: memref<1x384xf32, #tpu.memory_space<vmem>>, %arg6: memref<1x128xf32, #tpu.memory_space<vmem>>, %arg7: memref<1x1xf32, #tpu.memory_space<vmem>>, %arg8: memref<1x256xf32, #tpu.memory_space<vmem>>) attributes {dimension_semantics = [#tpu.dimension_semantics<arbitrary>], iteration_bounds = array<i64: 1>, scalar_prefetch = 0 : i64, scratch_operands = 0 : i64, tpu.core_type = #tpu.core_type<tc>, window_params = [{transform_indices = @transform_0, window_bounds = array<i64: 256, 128>}, {pipeline_mode = #tpu.pipeline_mode<synchronous>, transform_indices = @transform_1, window_bounds = array<i64: 128, 384>}, {pipeline_mode = #tpu.pipeline_mode<synchronous>, transform_indices = @transform_2, window_bounds = array<i64: 1, 384>}, {pipeline_mode = #tpu.pipeline_mode<synchronous>, transform_indices = @transform_3, window_bounds = array<i64: 128, 384>}, {pipeline_mode = #tpu.pipeline_mode<synchronous>, transform_indices = @transform_4, window_bounds = array<i64: 1, 384>}, {pipeline_mode = #tpu.pipeline_mode<synchronous>, transform_indices = @transform_5, window_bounds = array<i64: 1, 128>}, {pipeline_mode = #tpu.pipeline_mode<synchronous>, transform_indices = @transform_6, window_bounds = array<i64: 1, 1>}, {transform_indices = @transform_7, window_bounds = array<i64: 1, 256>}]} {
    %c0 = arith.constant 0 : index
    %c0_0 = arith.constant 0 : index
    %0 = vector.load %arg1[%c0, %c0_0] : memref<256x128xf32, #tpu.memory_space<vmem>>, vector<256x128xf32>
    %c0_1 = arith.constant 0 : index
    %c0_2 = arith.constant 0 : index
    %1 = vector.load %arg2[%c0_1, %c0_2] : memref<128x384xbf16, #tpu.memory_space<vmem>>, vector<128x384xbf16>
    %c0_3 = arith.constant 0 : index
    %c0_4 = arith.constant 0 : index
    %2 = vector.load %arg3[%c0_3, %c0_4] : memref<1x384xf32, #tpu.memory_space<vmem>>, vector<1x384xf32>
    %3 = arith.truncf %0 : vector<256x128xf32> to vector<256x128xbf16>
    %cst = arith.constant dense<0.000000e+00> : vector<256x384xf32>
    %4 = tpu.matmul %3, %1, %cst {dimension_numbers = #tpu.dot_dimension_numbers<[1], [0], [0], [1], [0, 0, 1, 1], [], []>} : vector<256x128xbf16>, vector<128x384xbf16>, vector<256x384xf32> -> vector<256x384xf32>
    %5 = vector.broadcast %2 : vector<1x384xf32> to vector<256x384xf32>
    %6 = arith.addf %4, %5 : vector<256x384xf32>
    %7 = vector.extract_strided_slice %6 {offsets = [0, 0], sizes = [256, 128], strides = [1, 1]} : vector<256x384xf32> to vector<256x128xf32>
    %8 = arith.negf %7 : vector<256x128xf32>
    %9 = math.exp %8 : vector<256x128xf32>
    %cst_5 = arith.constant 1.000000e+00 : f32
    %10 = vector.broadcast %cst_5 : f32 to vector<256x128xf32>
    %11 = arith.addf %10, %9 : vector<256x128xf32>
    %12 = arith.divf %10, %11 : vector<256x128xf32>
    %13 = vector.extract_strided_slice %6 {offsets = [0, 128], sizes = [256, 128], strides = [1, 1]} : vector<256x384xf32> to vector<256x128xf32>
    %14 = math.tanh %13 : vector<256x128xf32>
    %15 = vector.extract_strided_slice %6 {offsets = [0, 256], sizes = [256, 128], strides = [1, 1]} : vector<256x384xf32> to vector<256x128xf32>
    %16 = arith.negf %15 : vector<256x128xf32>
    %17 = math.exp %16 : vector<256x128xf32>
    %cst_6 = arith.constant 1.000000e+00 : f32
    %18 = vector.broadcast %cst_6 : f32 to vector<256x128xf32>
    %19 = arith.addf %18, %17 : vector<256x128xf32>
    %20 = arith.divf %18, %19 : vector<256x128xf32>
    %21 = arith.mulf %12, %14 : vector<256x128xf32>
    %22 = math.tanh %21 : vector<256x128xf32>
    %23 = arith.mulf %20, %22 : vector<256x128xf32>
    %c0_7 = arith.constant 0 : index
    %c0_8 = arith.constant 0 : index
    %24 = vector.load %arg4[%c0_7, %c0_8] : memref<128x384xbf16, #tpu.memory_space<vmem>>, vector<128x384xbf16>
    %c0_9 = arith.constant 0 : index
    %c0_10 = arith.constant 0 : index
    %25 = vector.load %arg5[%c0_9, %c0_10] : memref<1x384xf32, #tpu.memory_space<vmem>>, vector<1x384xf32>
    %26 = arith.truncf %23 : vector<256x128xf32> to vector<256x128xbf16>
    %cst_11 = arith.constant dense<0.000000e+00> : vector<256x384xf32>
    %27 = tpu.matmul %26, %24, %cst_11 {dimension_numbers = #tpu.dot_dimension_numbers<[1], [0], [0], [1], [0, 0, 1, 1], [], []>} : vector<256x128xbf16>, vector<128x384xbf16>, vector<256x384xf32> -> vector<256x384xf32>
    %28 = vector.broadcast %25 : vector<1x384xf32> to vector<256x384xf32>
    %29 = arith.addf %27, %28 : vector<256x384xf32>
    %30 = vector.extract_strided_slice %29 {offsets = [0, 0], sizes = [256, 128], strides = [1, 1]} : vector<256x384xf32> to vector<256x128xf32>
    %31 = arith.negf %30 : vector<256x128xf32>
    %32 = math.exp %31 : vector<256x128xf32>
    %cst_12 = arith.constant 1.000000e+00 : f32
    %33 = vector.broadcast %cst_12 : f32 to vector<256x128xf32>
    %34 = arith.addf %33, %32 : vector<256x128xf32>
    %35 = arith.divf %33, %34 : vector<256x128xf32>
    %36 = vector.extract_strided_slice %29 {offsets = [0, 128], sizes = [256, 128], strides = [1, 1]} : vector<256x384xf32> to vector<256x128xf32>
    %37 = math.tanh %36 : vector<256x128xf32>
    %38 = vector.extract_strided_slice %29 {offsets = [0, 256], sizes = [256, 128], strides = [1, 1]} : vector<256x384xf32> to vector<256x128xf32>
    %39 = arith.negf %38 : vector<256x128xf32>
    %40 = math.exp %39 : vector<256x128xf32>
    %cst_13 = arith.constant 1.000000e+00 : f32
    %41 = vector.broadcast %cst_13 : f32 to vector<256x128xf32>
    %42 = arith.addf %41, %40 : vector<256x128xf32>
    %43 = arith.divf %41, %42 : vector<256x128xf32>
    %44 = arith.mulf %35, %37 : vector<256x128xf32>
    %45 = math.tanh %44 : vector<256x128xf32>
    %46 = arith.mulf %43, %45 : vector<256x128xf32>
    %c0_14 = arith.constant 0 : index
    %c0_15 = arith.constant 0 : index
    %47 = vector.load %arg6[%c0_14, %c0_15] : memref<1x128xf32, #tpu.memory_space<vmem>>, vector<1x128xf32>
    %48 = vector.broadcast %47 : vector<1x128xf32> to vector<256x128xf32>
    %49 = arith.mulf %46, %48 : vector<256x128xf32>
    %cst_16 = arith.constant dense<0.000000e+00> : vector<256xf32>
    %50 = vector.multi_reduction <add>, %49, %cst_16 [1] : vector<256x128xf32> to vector<256xf32>
    %51 = vector.shape_cast %50 : vector<256xf32> to vector<256x1xf32>
    %c0_17 = arith.constant 0 : index
    %c0_18 = arith.constant 0 : index
    %52 = vector.load %arg7[%c0_17, %c0_18] : memref<1x1xf32, #tpu.memory_space<vmem>>, vector<1x1xf32>
    %53 = vector.broadcast %52 : vector<1x1xf32> to vector<256x1xf32>
    %54 = arith.addf %51, %53 : vector<256x1xf32>
    %55 = tpu.transpose %54, [1, 0] : vector<256x1xf32> -> vector<1x256xf32>
    %c0_19 = arith.constant 0 : index
    %c0_20 = arith.constant 0 : index
    %56 = vector.load %arg8[%c0_19, %c0_20] : memref<1x256xf32, #tpu.memory_space<vmem>>, vector<1x256xf32>
    tpu.vector_store %arg8[%c0_19, %c0_20], %55 {strides = array<i32>} : memref<1x256xf32, #tpu.memory_space<vmem>>, vector<1x256xf32>,
    return
  }
  func.func @transform_0(%arg0: i32) -> (i32, i32) {
    %c0_i32 = arith.constant 0 : i32
    %c0_i32_0 = arith.constant 0 : i32
    return %arg0, %c0_i32 : i32, i32
  }
  func.func @transform_1(%arg0: i32) -> (i32, i32) {
    %c0_i32 = arith.constant 0 : i32
    %c0_i32_0 = arith.constant 0 : i32
    %c0_i32_1 = arith.constant 0 : i32
    return %c0_i32, %c0_i32_0 : i32, i32
  }
  func.func @transform_2(%arg0: i32) -> (i32, i32) {
    %c0_i32 = arith.constant 0 : i32
    %c0_i32_0 = arith.constant 0 : i32
    %c0_i32_1 = arith.constant 0 : i32
    return %c0_i32, %c0_i32_0 : i32, i32
  }
  func.func @transform_3(%arg0: i32) -> (i32, i32) {
    %c0_i32 = arith.constant 0 : i32
    %c0_i32_0 = arith.constant 0 : i32
    %c0_i32_1 = arith.constant 0 : i32
    return %c0_i32, %c0_i32_0 : i32, i32
  }
  func.func @transform_4(%arg0: i32) -> (i32, i32) {
    %c0_i32 = arith.constant 0 : i32
    %c0_i32_0 = arith.constant 0 : i32
    %c0_i32_1 = arith.constant 0 : i32
    return %c0_i32, %c0_i32_0 : i32, i32
  }
  func.func @transform_5(%arg0: i32) -> (i32, i32) {
    %c0_i32 = arith.constant 0 : i32
    %c0_i32_0 = arith.constant 0 : i32
    %c0_i32_1 = arith.constant 0 : i32
    return %c0_i32, %c0_i32_0 : i32, i32
  }
  func.func @transform_6(%arg0: i32) -> (i32, i32) {
    %c0_i32 = arith.constant 0 : i32
    %c0_i32_0 = arith.constant 0 : i32
    %c0_i32_1 = arith.constant 0 : i32
    return %c0_i32, %c0_i32_0 : i32, i32
  }
  func.func @transform_7(%arg0: i32) -> (i32, i32) {
    %c0_i32 = arith.constant 0 : i32
    %c0_i32_0 = arith.constant 0 : i32
    return %arg0, %c0_i32 : i32, i32
  }
}

</mosaic_0001>

<llo_original>
// kernel: tpu_custom_call.1
$region0: #{tpu_custom_call.1}
  #allocation0 [shape = 'u32[]', space=smem, size = 0x4, offset = 0x4, fixed_abs, tag = 'smem constant byte address 0x4 - core index']
  #allocation1 [shape = 'u32[144,128]{1,0:T(1,128)}', space=vmem, size = 0x12000, scoped, tag = 'internal scratch']
  #allocation2 [shape = 'f32[1,1]{1,0:T(1,128)S(1)}', space=vmem, size = 0x200, scoped, tag = 'scoped memory for tpu_custom_call.1']
  %s0 = inlined_call_operand.hbm [shape: f32[256,128], index: 0, kind: input, shape index: {}]
  %s1 = inlined_call_operand.hbm [shape: bf16[128,384], index: 1, kind: input, shape index: {}]
  %s2 = inlined_call_operand.vmem [shape: f32[1,384], index: 2, kind: input, shape index: {}]
  %s3 = inlined_call_operand.hbm [shape: bf16[128,384], index: 3, kind: input, shape index: {}]
  %s4 = inlined_call_operand.vmem [shape: f32[1,384], index: 4, kind: input, shape index: {}]
  %s5 = inlined_call_operand.vmem [shape: f32[1,128], index: 5, kind: input, shape index: {}]
  %s6 = inlined_call_operand.<no memory space> [shape: f32[1,1], index: 6, kind: input, shape index: {}]
  %s7 = inlined_call_operand.hbm [shape: f32[1,256], index: 7, kind: output, shape index: {}]
  %s8 = sld [smem:[#allocation0]]
  $region50: #{tpu_custom_call.1} parent=0
    _
  %s10 = ssub.s32 1, %s8
  %s11 = scalar_select 0, %s10, %s8
  %v12 = vstv %s6
  %13 = vst [vmem:[#allocation2] sm:$0x1] %v12
  $region1: #{tpu_custom_call.1} parent=0
    #allocation3 [shape = 'u8[131072]{0}', space=vmem, size = 0x20000, scoped, tag = 'input window, operand 0, single buffered']
    #allocation4 [shape = 's32[1]{0}', space=sflag, size = 0x4, scoped, tag = 'scoped memory for tpu_custom_call.1']
    #allocation5 [shape = 's32[1]{0}', space=sflag, size = 0x4, scoped, tag = 'scoped memory for tpu_custom_call.1']
    #allocation6 [shape = 'u8[98304]{0}', space=vmem, size = 0x18000, scoped, tag = 'input window, operand 1, single buffered']
    #allocation7 [shape = 's32[1]{0}', space=sflag, size = 0x4, scoped, tag = 'scoped memory for tpu_custom_call.1']
    #allocation8 [shape = 'u8[98304]{0}', space=vmem, size = 0x18000, scoped, tag = 'input window, operand 3, single buffered']
    #allocation9 [shape = 'u8[1024]{0}', space=vmem, size = 0x400, scoped, tag = 'output window, operand 0, single buffered']
    %14 = vsyncpa [#allocation4], 0
    %15 = vsyncpa [#allocation7], 0
    %16 = vsyncpa [#allocation5], 0
    // Predicated region
    $region2: #{tpu_custom_call.1} parent=1 // pred_check
      _
    $region3: #{tpu_custom_call.1} parent=1 // pred_check_branch
      %18 = sbr.rel (0) target = $region5
    $region4: #{tpu_custom_call.1} parent=1 // pred_region
      %s20 = ssub.s32 4096, 4096
      %21 = vsyncadd [#allocation4], %s20
      %s22 = sshll.u32 [#allocation3], 4
      %s23 = int_to_ptr.vmem [resolvable:$true] %s22
      %28 = dma.hbm_to_vmem [thread:$0]  %s0, 4096, %s23, [#allocation4], 128, 128, 8
    $region5: #{tpu_custom_call.1} parent=1 // pred_fallthru
      _
    // Predicated region
    $region6: #{tpu_custom_call.1} parent=1 // pred_check
      _
    $region7: #{tpu_custom_call.1} parent=1 // pred_check_branch
      %30 = sbr.rel (0) target = $region9
    $region8: #{tpu_custom_call.1} parent=1 // pred_region
      %s32 = ssub.s32 3072, 3072
      %33 = vsyncadd [#allocation7], %s32
      %s34 = sshll.u32 [#allocation6], 4
      %s35 = int_to_ptr.vmem [resolvable:$true] %s34
      %40 = dma.hbm_to_vmem [thread:$0]  %s1, 3072, %s35, [#allocation7], 192, 192, 12
    $region9: #{tpu_custom_call.1} parent=1 // pred_fallthru
      _
    // Predicated region
    $region10: #{tpu_custom_call.1} parent=1 // pred_check
      _
    $region11: #{tpu_custom_call.1} parent=1 // pred_check_branch
      %42 = sbr.rel (0) target = $region13
    $region12: #{tpu_custom_call.1} parent=1 // pred_region
      _
    $region13: #{tpu_custom_call.1} parent=1 // pred_fallthru
      _
    // Predicated region
    $region14: #{tpu_custom_call.1} parent=1 // pred_check
      _
    $region15: #{tpu_custom_call.1} parent=1 // pred_check_branch
      %44 = sbr.rel (0) target = $region17
    $region16: #{tpu_custom_call.1} parent=1 // pred_region
      %s46 = ssub.s32 3072, 3072
      %47 = vsyncadd [#allocation7], %s46
      %s48 = sshll.u32 [#allocation8], 4
      %s49 = int_to_ptr.vmem [resolvable:$true] %s48
      %54 = dma.hbm_to_vmem [thread:$0]  %s3, 3072, %s49, [#allocation7], 192, 192, 12
    $region17: #{tpu_custom_call.1} parent=1 // pred_fallthru
      _
    // Predicated region
    $region18: #{tpu_custom_call.1} parent=1 // pred_check
      _
    $region19: #{tpu_custom_call.1} parent=1 // pred_check_branch
      %56 = sbr.rel (0) target = $region21
    $region20: #{tpu_custom_call.1} parent=1 // pred_region
      _
    $region21: #{tpu_custom_call.1} parent=1 // pred_fallthru
      _
    // Predicated region
    $region22: #{tpu_custom_call.1} parent=1 // pred_check
      _
    $region23: #{tpu_custom_call.1} parent=1 // pred_check_branch
      %58 = sbr.rel (0) target = $region25
    $region24: #{tpu_custom_call.1} parent=1 // pred_region
      _
    $region25: #{tpu_custom_call.1} parent=1 // pred_fallthru
      _
    // Predicated region
    $region26: #{tpu_custom_call.1} parent=1 // pred_check
      _
    $region27: #{tpu_custom_call.1} parent=1 // pred_check_branch
      %60 = sbr.rel (0) target = $region29
    $region28: #{tpu_custom_call.1} parent=1 // pred_region
      _
    $region29: #{tpu_custom_call.1} parent=1 // pred_fallthru
      _
    // Predicated region
    $region30: #{tpu_custom_call.1} parent=1 // pred_check
      _
    $region31: #{tpu_custom_call.1} parent=1 // pred_check_branch
      %62 = sbr.rel (0) target = $region33
    $region32: #{tpu_custom_call.1} parent=1 // pred_region
      %63 = dma.done [#allocation4], 4096
    $region33: #{tpu_custom_call.1} parent=1 // pred_fallthru
      _
    // Predicated region
    $region34: #{tpu_custom_call.1} parent=1 // pred_check
      _
    $region35: #{tpu_custom_call.1} parent=1 // pred_check_branch
      %65 = sbr.rel (0) target = $region37
    $region36: #{tpu_custom_call.1} parent=1 // pred_region
      %66 = dma.done [#allocation7], 3072
    $region37: #{tpu_custom_call.1} parent=1 // pred_fallthru
      _
    // Predicated region
    $region38: #{tpu_custom_call.1} parent=1 // pred_check
      _
    $region39: #{tpu_custom_call.1} parent=1 // pred_check_branch
      %68 = sbr.rel (0) target = $region41
    $region40: #{tpu_custom_call.1} parent=1 // pred_region
      %69 = dma.done [#allocation7], 3072
    $region41: #{tpu_custom_call.1} parent=1 // pred_fallthru
      _
    %v71 = vld [vmem:[#allocation3] sm:$0xff]
    %v72 = vld [vmem:[#allocation3 + $0x8] sm:$0xff]
    %v73 = vld [vmem:[#allocation3 + $0x10] sm:$0xff]
    %v74 = vld [vmem:[#allocation3 + $0x18] sm:$0xff]
    %v75 = vld [vmem:[#allocation3 + $0x20] sm:$0xff]
    %v76 = vld [vmem:[#allocation3 + $0x28] sm:$0xff]
    %v77 = vld [vmem:[#allocation3 + $0x30] sm:$0xff]
    %v78 = vld [vmem:[#allocation3 + $0x38] sm:$0xff]
    %v79 = vld [vmem:[#allocation3 + $0x40] sm:$0xff]
    %v80 = vld [vmem:[#allocation3 + $0x48] sm:$0xff]
    %v81 = vld [vmem:[#allocation3 + $0x50] sm:$0xff]
    %v82 = vld [vmem:[#allocation3 + $0x58] sm:$0xff]
    %v83 = vld [vmem:[#allocation3 + $0x60] sm:$0xff]
    %v84 = vld [vmem:[#allocation3 + $0x68] sm:$0xff]
    %v85 = vld [vmem:[#allocation3 + $0x70] sm:$0xff]
    %v86 = vld [vmem:[#allocation3 + $0x78] sm:$0xff]
    %v87 = vld [vmem:[#allocation3 + $0x80] sm:$0xff]
    %v88 = vld [vmem:[#allocation3 + $0x88] sm:$0xff]
    %v89 = vld [vmem:[#allocation3 + $0x90] sm:$0xff]
    %v90 = vld [vmem:[#allocation3 + $0x98] sm:$0xff]
    %v91 = vld [vmem:[#allocation3 + $0xa0] sm:$0xff]
    %v92 = vld [vmem:[#allocation3 + $0xa8] sm:$0xff]
    %v93 = vld [vmem:[#allocation3 + $0xb0] sm:$0xff]
    %v94 = vld [vmem:[#allocation3 + $0xb8] sm:$0xff]
    %v95 = vld [vmem:[#allocation3 + $0xc0] sm:$0xff]
    %v96 = vld [vmem:[#allocation3 + $0xc8] sm:$0xff]
    %v97 = vld [vmem:[#allocation3 + $0xd0] sm:$0xff]
    %v98 = vld [vmem:[#allocation3 + $0xd8] sm:$0xff]
    %v99 = vld [vmem:[#allocation3 + $0xe0] sm:$0xff]
    %v100 = vld [vmem:[#allocation3 + $0xe8] sm:$0xff]
    %v101 = vld [vmem:[#allocation3 + $0xf0] sm:$0xff]
    %v102 = vld [vmem:[#allocation3 + $0xf8] sm:$0xff]
    %v103 = vld [vmem:[#allocation6] sm:$0xff]
    %v104 = vld [vmem:[#allocation6 + $0x8] sm:$0xf]
    %v105 = vld [vmem:[#allocation6 + $0xc] sm:$0xff]
    %v106 = vld [vmem:[#allocation6 + $0x14] sm:$0xf]
    %v107 = vld [vmem:[#allocation6 + $0x18] sm:$0xff]
    %v108 = vld [vmem:[#allocation6 + $0x20] sm:$0xf]
    %v109 = vld [vmem:[#allocation6 + $0x24] sm:$0xff]
    %v110 = vld [vmem:[#allocation6 + $0x2c] sm:$0xf]
    %v111 = vld [vmem:[#allocation6 + $0x30] sm:$0xff]
    %v112 = vld [vmem:[#allocation6 + $0x38] sm:$0xf]
    %v113 = vld [vmem:[#allocation6 + $0x3c] sm:$0xff]
    %v114 = vld [vmem:[#allocation6 + $0x44] sm:$0xf]
    %v115 = vld [vmem:[#allocation6 + $0x48] sm:$0xff]
    %v116 = vld [vmem:[#allocation6 + $0x50] sm:$0xf]
    %v117 = vld [vmem:[#allocation6 + $0x54] sm:$0xff]
    %v118 = vld [vmem:[#allocation6 + $0x5c] sm:$0xf]
    %v119 = vld [vmem:[#allocation6 + $0x60] sm:$0xff]
    %v120 = vld [vmem:[#allocation6 + $0x68] sm:$0xf]
    %v121 = vld [vmem:[#allocation6 + $0x6c] sm:$0xff]
    %v122 = vld [vmem:[#allocation6 + $0x74] sm:$0xf]
    %v123 = vld [vmem:[#allocation6 + $0x78] sm:$0xff]
    %v124 = vld [vmem:[#allocation6 + $0x80] sm:$0xf]
    %v125 = vld [vmem:[#allocation6 + $0x84] sm:$0xff]
    %v126 = vld [vmem:[#allocation6 + $0x8c] sm:$0xf]
    %v127 = vld [vmem:[#allocation6 + $0x90] sm:$0xff]
    %v128 = vld [vmem:[#allocation6 + $0x98] sm:$0xf]
    %v129 = vld [vmem:[#allocation6 + $0x9c] sm:$0xff]
    %v130 = vld [vmem:[#allocation6 + $0xa4] sm:$0xf]
    %v131 = vld [vmem:[#allocation6 + $0xa8] sm:$0xff]
    %v132 = vld [vmem:[#allocation6 + $0xb0] sm:$0xf]
    %v133 = vld [vmem:[#allocation6 + $0xb4] sm:$0xff]
    %v134 = vld [vmem:[#allocation6 + $0xbc] sm:$0xf]
    %v135 = vld [vmem:[%s2] sm:$0x7]
    %v136 = vpack.c.bf16 %v72, %v71
    %v137 = vpack.c.bf16 %v74, %v73
    %v138 = vpack.c.bf16 %v76, %v75
    %v139 = vpack.c.bf16 %v78, %v77
    %v140 = vpack.c.bf16 %v80, %v79
    %v141 = vpack.c.bf16 %v82, %v81
    %v142 = vpack.c.bf16 %v84, %v83
    %v143 = vpack.c.bf16 %v86, %v85
    %v144 = vpack.c.bf16 %v88, %v87
    %v145 = vpack.c.bf16 %v90, %v89
    %v146 = vpack.c.bf16 %v92, %v91
    %v147 = vpack.c.bf16 %v94, %v93
    %v148 = vpack.c.bf16 %v96, %v95
    %v149 = vpack.c.bf16 %v98, %v97
    %v150 = vpack.c.bf16 %v100, %v99
    %v151 = vpack.c.bf16 %v102, %v101
    %v153 = vlaneseq
    %v154 = vshrl.u32 %v153, 7
    %v155 = vsub.s32 0, %v154
    %v156 = vrot.slane %v135, %v155
    %v157 = vlaneseq
    %v158 = vshrl.u32 %v157, 7
    %v159 = vsub.s32 1, %v158
    %v160 = vrot.slane %v135, %v159
    %v161 = vlaneseq
    %v162 = vshrl.u32 %v161, 7
    %v163 = vsub.s32 2, %v162
    %v164 = vrot.slane %v135, %v163
    %v200 = vunpack.c.l.b16 %v103
    %v201 = vunpack.c.h.b16 %v103
    %v202 = vunpack.c.l.b16 %v104
    %v203 = vunpack.c.l.b16 %v105
    %v204 = vunpack.c.h.b16 %v105
    %v205 = vunpack.c.l.b16 %v106
    %v206 = vunpack.c.l.b16 %v107
    %v207 = vunpack.c.h.b16 %v107
    %v208 = vunpack.c.l.b16 %v108
    %v209 = vunpack.c.l.b16 %v109
    %v210 = vunpack.c.h.b16 %v109
    %v211 = vunpack.c.l.b16 %v110
    %v212 = vunpack.c.l.b16 %v111
    %v213 = vunpack.c.h.b16 %v111
    %v214 = vunpack.c.l.b16 %v112
    %v215 = vunpack.c.l.b16 %v113
    %v216 = vunpack.c.h.b16 %v113
    %v217 = vunpack.c.l.b16 %v114
    %v218 = vunpack.c.l.b16 %v115
    %v219 = vunpack.c.h.b16 %v115
    %v220 = vunpack.c.l.b16 %v116
    %v221 = vunpack.c.l.b16 %v117
    %v222 = vunpack.c.h.b16 %v117
    %v223 = vunpack.c.l.b16 %v118
    %v224 = vunpack.c.l.b16 %v119
    %v225 = vunpack.c.h.b16 %v119
    %v226 = vunpack.c.l.b16 %v120
    %v227 = vunpack.c.l.b16 %v121
    %v228 = vunpack.c.h.b16 %v121
    %v229 = vunpack.c.l.b16 %v122
    %v230 = vunpack.c.l.b16 %v123
    %v231 = vunpack.c.h.b16 %v123
    %v232 = vunpack.c.l.b16 %v124
    %v233 = vunpack.c.l.b16 %v125
    %v234 = vunpack.c.h.b16 %v125
    %v235 = vunpack.c.l.b16 %v126
    %v236 = vunpack.c.l.b16 %v127
    %v237 = vunpack.c.h.b16 %v127
    %v238 = vunpack.c.l.b16 %v128
    %v239 = vunpack.c.l.b16 %v129
    %v240 = vunpack.c.h.b16 %v129
    %v241 = vunpack.c.l.b16 %v130
    %v242 = vunpack.c.l.b16 %v131
    %v243 = vunpack.c.h.b16 %v131
    %v244 = vunpack.c.l.b16 %v132
    %v245 = vunpack.c.l.b16 %v133
    %v246 = vunpack.c.h.b16 %v133
    %v247 = vunpack.c.l.b16 %v134
    %v248 = vpack.c.b16 %v203, %v200
    %v249 = vpack.c.b16 %v204, %v201
    %v250 = vpack.c.b16 %v205, %v202
    %v251 = vpack.c.b16 %v209, %v206
    %v252 = vpack.c.b16 %v210, %v207
    %v253 = vpack.c.b16 %v211, %v208
    %v254 = vpack.c.b16 %v215, %v212
    %v255 = vpack.c.b16 %v216, %v213
    %v256 = vpack.c.b16 %v217, %v214
    %v257 = vpack.c.b16 %v221, %v218
    %v258 = vpack.c.b16 %v222, %v219
    %v259 = vpack.c.b16 %v223, %v220
    %v260 = vpack.c.b16 %v227, %v224
    %v261 = vpack.c.b16 %v228, %v225
    %v262 = vpack.c.b16 %v229, %v226
    %v263 = vpack.c.b16 %v233, %v230
    %v264 = vpack.c.b16 %v234, %v231
    %v265 = vpack.c.b16 %v235, %v232
    %v266 = vpack.c.b16 %v239, %v236
    %v267 = vpack.c.b16 %v240, %v237
    %v268 = vpack.c.b16 %v241, %v238
    %v269 = vpack.c.b16 %v245, %v242
    %v270 = vpack.c.b16 %v246, %v243
    %v271 = vpack.c.b16 %v247, %v244
    %296 = vmatprep.subr.bf16.mxu0 %v270
    %297 = vmatpush1.bf16.msra.mxu0 %v269
    %298 = vmatprep.subr.bf16.mxu0 %v267
    %299 = vmatpush1.bf16.msra.mxu0 %v266
    %300 = vmatprep.subr.bf16.mxu0 %v264
    %301 = vmatpush1.bf16.msra.mxu0 %v263
    %302 = vmatprep.subr.bf16.mxu0 %v261
    %303 = vmatpush1.bf16.msra.mxu0 %v260
    %304 = vmatprep.subr.bf16.mxu0 %v258
    %305 = vmatpush1.bf16.msra.mxu0 %v257
    %306 = vmatprep.subr.bf16.mxu0 %v255
    %307 = vmatpush1.bf16.msra.mxu0 %v254
    %308 = vmatprep.subr.bf16.mxu0 %v252
    %309 = vmatpush1.bf16.msra.mxu0 %v251
    %310 = vmatprep.subr.bf16.mxu0 %v249
    %311 = vmatpush1.bf16.msra.mxu0 %v248
    %312 = vmatprep.subr.bf16.mxu0 0
    %313 = vmatpush2.bf16.msra.mxu0 0
    %314 = vmatprep.subr.bf16.mxu0 0
    %315 = vmatpush2.bf16.msra.mxu0 0
    %316 = vmatprep.subr.bf16.mxu0 0
    %317 = vmatpush2.bf16.msra.mxu0 0
    %318 = vmatprep.subr.bf16.mxu0 0
    %319 = vmatpush2.bf16.msra.mxu0 0
    %320 = vmatprep.subr.bf16.mxu0 0
    %321 = vmatpush2.bf16.msra.mxu0 0
    %322 = vmatprep.subr.bf16.mxu0 0
    %323 = vmatpush2.bf16.msra.mxu0 0
    %324 = vmatprep.subr.bf16.mxu0 0
    %325 = vmatpush2.bf16.msra.mxu0 0
    %326 = vmatprep.subr.bf16.mxu0 0
    %327 = vmatpush2.bf16.msra.mxu0 0
    %328 = vmatprep.mubr.bf16.mxu0 0
    %329 = vmatmul.mubr.bf16.gmra.mxu0 %v136
    %v330 = vpop.f32.mrf.mxu0
    %v331 = vadd.f32 %v156, %v330
    %v332 = vpop.f32.mrf.mxu0
    %v333 = vadd.f32 %v160, %v332
    %v334 = vpop.f32.mrf.mxu0
    %v335 = vadd.f32 %v156, %v334
    %v336 = vpop.f32.mrf.mxu0
    %v337 = vadd.f32 %v160, %v336
    %338 = vmatprep.mubr.bf16.mxu0 0
    %339 = vmatmul.mubr.bf16.gmra.mxu0 %v137
    %v340 = vpop.f32.mrf.mxu0
    %v341 = vadd.f32 %v156, %v340
    %v342 = vpop.f32.mrf.mxu0
    %v343 = vadd.f32 %v160, %v342
    %v344 = vpop.f32.mrf.mxu0
    %v345 = vadd.f32 %v156, %v344
    %v346 = vpop.f32.mrf.mxu0
    %v347 = vadd.f32 %v160, %v346
    %348 = vmatprep.mubr.bf16.mxu0 0
    %349 = vmatmul.mubr.bf16.gmra.mxu0 %v138
    %v350 = vpop.f32.mrf.mxu0
    %v351 = vadd.f32 %v156, %v350
    %v352 = vpop.f32.mrf.mxu0
    %v353 = vadd.f32 %v160, %v352
    %v354 = vpop.f32.mrf.mxu0
    %v355 = vadd.f32 %v156, %v354
    %v356 = vpop.f32.mrf.mxu0
    %v357 = vadd.f32 %v160, %v356
    %358 = vmatprep.mubr.bf16.mxu0 0
    %359 = vmatmul.mubr.bf16.gmra.mxu0 %v139
    %v360 = vpop.f32.mrf.mxu0
    %v361 = vadd.f32 %v156, %v360
    %v362 = vpop.f32.mrf.mxu0
    %v363 = vadd.f32 %v160, %v362
    %v364 = vpop.f32.mrf.mxu0
    %v365 = vadd.f32 %v156, %v364
    %v366 = vpop.f32.mrf.mxu0
    %v367 = vadd.f32 %v160, %v366
    %368 = vmatprep.mubr.bf16.mxu0 0
    %369 = vmatmul.mubr.bf16.gmra.mxu0 %v140
    %v370 = vpop.f32.mrf.mxu0
    %v371 = vadd.f32 %v156, %v370
    %v372 = vpop.f32.mrf.mxu0
    %v373 = vadd.f32 %v160, %v372
    %v374 = vpop.f32.mrf.mxu0
    %v375 = vadd.f32 %v156, %v374
    %v376 = vpop.f32.mrf.mxu0
    %v377 = vadd.f32 %v160, %v376
    %378 = vmatprep.mubr.bf16.mxu0 0
    %379 = vmatmul.mubr.bf16.gmra.mxu0 %v141
    %v380 = vpop.f32.mrf.mxu0
    %v381 = vadd.f32 %v156, %v380
    %v382 = vpop.f32.mrf.mxu0
    %v383 = vadd.f32 %v160, %v382
    %v384 = vpop.f32.mrf.mxu0
    %v385 = vadd.f32 %v156, %v384
    %v386 = vpop.f32.mrf.mxu0
    %v387 = vadd.f32 %v160, %v386
    %388 = vmatprep.mubr.bf16.mxu0 0
    %389 = vmatmul.mubr.bf16.gmra.mxu0 %v142
    %v390 = vpop.f32.mrf.mxu0
    %v391 = vadd.f32 %v156, %v390
    %v392 = vpop.f32.mrf.mxu0
    %v393 = vadd.f32 %v160, %v392
    %v394 = vpop.f32.mrf.mxu0
    %v395 = vadd.f32 %v156, %v394
    %v396 = vpop.f32.mrf.mxu0
    %v397 = vadd.f32 %v160, %v396
    %398 = vmatprep.mubr.bf16.mxu0 0
    %399 = vmatmul.mubr.bf16.gmra.mxu0 %v143
    %v400 = vpop.f32.mrf.mxu0
    %v401 = vadd.f32 %v156, %v400
    %v402 = vpop.f32.mrf.mxu0
    %v403 = vadd.f32 %v160, %v402
    %v404 = vpop.f32.mrf.mxu0
    %v405 = vadd.f32 %v156, %v404
    %v406 = vpop.f32.mrf.mxu0
    %v407 = vadd.f32 %v160, %v406
    %408 = vmatprep.mubr.bf16.mxu0 0
    %409 = vmatmul.mubr.bf16.gmra.mxu0 %v144
    %v410 = vpop.f32.mrf.mxu0
    %v411 = vadd.f32 %v156, %v410
    %v412 = vpop.f32.mrf.mxu0
    %v413 = vadd.f32 %v160, %v412
    %v414 = vpop.f32.mrf.mxu0
    %v415 = vadd.f32 %v156, %v414
    %v416 = vpop.f32.mrf.mxu0
    %v417 = vadd.f32 %v160, %v416
    %418 = vmatprep.mubr.bf16.mxu0 0
    %419 = vmatmul.mubr.bf16.gmra.mxu0 %v145
    %v420 = vpop.f32.mrf.mxu0
    %v421 = vadd.f32 %v156, %v420
    %v422 = vpop.f32.mrf.mxu0
    %v423 = vadd.f32 %v160, %v422
    %v424 = vpop.f32.mrf.mxu0
    %v425 = vadd.f32 %v156, %v424
    %v426 = vpop.f32.mrf.mxu0
    %v427 = vadd.f32 %v160, %v426
    %428 = vmatprep.mubr.bf16.mxu0 0
    %429 = vmatmul.mubr.bf16.gmra.mxu0 %v146
    %v430 = vpop.f32.mrf.mxu0
    %v431 = vadd.f32 %v156, %v430
    %v432 = vpop.f32.mrf.mxu0
    %v433 = vadd.f32 %v160, %v432
    %v434 = vpop.f32.mrf.mxu0
    %v435 = vadd.f32 %v156, %v434
    %v436 = vpop.f32.mrf.mxu0
    %v437 = vadd.f32 %v160, %v436
    %438 = vmatprep.mubr.bf16.mxu0 0
    %439 = vmatmul.mubr.bf16.gmra.mxu0 %v147
    %v440 = vpop.f32.mrf.mxu0
    %v441 = vadd.f32 %v156, %v440
    %v442 = vpop.f32.mrf.mxu0
    %v443 = vadd.f32 %v160, %v442
    %v444 = vpop.f32.mrf.mxu0
    %v445 = vadd.f32 %v156, %v444
    %v446 = vpop.f32.mrf.mxu0
    %v447 = vadd.f32 %v160, %v446
    %448 = vmatprep.mubr.bf16.mxu0 0
    %449 = vmatmul.mubr.bf16.gmra.mxu0 %v148
    %v450 = vpop.f32.mrf.mxu0
    %v451 = vadd.f32 %v156, %v450
    %v452 = vpop.f32.mrf.mxu0
    %v453 = vadd.f32 %v160, %v452
    %v454 = vpop.f32.mrf.mxu0
    %v455 = vadd.f32 %v156, %v454
    %v456 = vpop.f32.mrf.mxu0
    %v457 = vadd.f32 %v160, %v456
    %458 = vmatprep.mubr.bf16.mxu0 0
    %459 = vmatmul.mubr.bf16.gmra.mxu0 %v149
    %v460 = vpop.f32.mrf.mxu0
    %v461 = vadd.f32 %v156, %v460
    %v462 = vpop.f32.mrf.mxu0
    %v463 = vadd.f32 %v160, %v462
    %v464 = vpop.f32.mrf.mxu0
    %v465 = vadd.f32 %v156, %v464
    %v466 = vpop.f32.mrf.mxu0
    %v467 = vadd.f32 %v160, %v466
    %468 = vmatprep.mubr.bf16.mxu0 0
    %469 = vmatmul.mubr.bf16.gmra.mxu0 %v150
    %v470 = vpop.f32.mrf.mxu0
    %v471 = vadd.f32 %v156, %v470
    %v472 = vpop.f32.mrf.mxu0
    %v473 = vadd.f32 %v160, %v472
    %v474 = vpop.f32.mrf.mxu0
    %v475 = vadd.f32 %v156, %v474
    %v476 = vpop.f32.mrf.mxu0
    %v477 = vadd.f32 %v160, %v476
    %478 = vmatprep.mubr.bf16.mxu0 0
    %479 = vmatmul.mubr.bf16.gmra.mxu0 %v151
    %v480 = vpop.f32.mrf.mxu0
    %v481 = vadd.f32 %v156, %v480
    %v482 = vpop.f32.mrf.mxu0
    %v483 = vadd.f32 %v160, %v482
    %v484 = vpop.f32.mrf.mxu0
    %v485 = vadd.f32 %v156, %v484
    %v486 = vpop.f32.mrf.mxu0
    %v487 = vadd.f32 %v160, %v486
    %488 = vdwg.mxu0
    %489 = vmatprep.subr.bf16.mxu0 0
    %490 = vmatpush1.bf16.msra.mxu0 %v271
    %491 = vmatprep.subr.bf16.mxu0 0
    %492 = vmatpush1.bf16.msra.mxu0 %v268
    %493 = vmatprep.subr.bf16.mxu0 0
    %494 = vmatpush1.bf16.msra.mxu0 %v265
    %495 = vmatprep.subr.bf16.mxu0 0
    %496 = vmatpush1.bf16.msra.mxu0 %v262
    %497 = vmatprep.subr.bf16.mxu0 0
    %498 = vmatpush1.bf16.msra.mxu0 %v259
    %499 = vmatprep.subr.bf16.mxu0 0
    %500 = vmatpush1.bf16.msra.mxu0 %v256
    %501 = vmatprep.subr.bf16.mxu0 0
    %502 = vmatpush1.bf16.msra.mxu0 %v253
    %503 = vmatprep.subr.bf16.mxu0 0
    %504 = vmatpush1.bf16.msra.mxu0 %v250
    %505 = vmatprep.subr.bf16.mxu0 0
    %506 = vmatpush2.bf16.msra.mxu0 0
    %507 = vmatprep.subr.bf16.mxu0 0
    %508 = vmatpush2.bf16.msra.mxu0 0
    %509 = vmatprep.subr.bf16.mxu0 0
    %510 = vmatpush2.bf16.msra.mxu0 0
    %511 = vmatprep.subr.bf16.mxu0 0
    %512 = vmatpush2.bf16.msra.mxu0 0
    %513 = vmatprep.subr.bf16.mxu0 0
    %514 = vmatpush2.bf16.msra.mxu0 0
    %515 = vmatprep.subr.bf16.mxu0 0
    %516 = vmatpush2.bf16.msra.mxu0 0
    %517 = vmatprep.subr.bf16.mxu0 0
    %518 = vmatpush2.bf16.msra.mxu0 0
    %519 = vmatprep.subr.bf16.mxu0 0
    %520 = vmatpush2.bf16.msra.mxu0 0
    %521 = vmatprep.mubr.bf16.mxu0 0
    %522 = vmatmul.mubr.bf16.gmra.mxu0 %v136
    %v523 = vpop.f32.mrf.mxu0
    %v524 = vadd.f32 %v164, %v523
    %v525 = vpop.f32.mrf.mxu0
    %v526 = vpop.f32.mrf.mxu0
    %v527 = vadd.f32 %v164, %v526
    %v528 = vpop.f32.mrf.mxu0
    %529 = vmatprep.mubr.bf16.mxu0 0
    %530 = vmatmul.mubr.bf16.gmra.mxu0 %v137
    %v531 = vpop.f32.mrf.mxu0
    %v532 = vadd.f32 %v164, %v531
    %v533 = vpop.f32.mrf.mxu0
    %v534 = vpop.f32.mrf.mxu0
    %v535 = vadd.f32 %v164, %v534
    %v536 = vpop.f32.mrf.mxu0
    %537 = vmatprep.mubr.bf16.mxu0 0
    %538 = vmatmul.mubr.bf16.gmra.mxu0 %v138
    %v539 = vpop.f32.mrf.mxu0
    %v540 = vadd.f32 %v164, %v539
    %v541 = vpop.f32.mrf.mxu0
    %v542 = vpop.f32.mrf.mxu0
    %v543 = vadd.f32 %v164, %v542
    %v544 = vpop.f32.mrf.mxu0
    %545 = vmatprep.mubr.bf16.mxu0 0
    %546 = vmatmul.mubr.bf16.gmra.mxu0 %v139
    %v547 = vpop.f32.mrf.mxu0
    %v548 = vadd.f32 %v164, %v547
    %v549 = vpop.f32.mrf.mxu0
    %v550 = vpop.f32.mrf.mxu0
    %v551 = vadd.f32 %v164, %v550
    %v552 = vpop.f32.mrf.mxu0
    %553 = vmatprep.mubr.bf16.mxu0 0
    %554 = vmatmul.mubr.bf16.gmra.mxu0 %v140
    %v555 = vpop.f32.mrf.mxu0
    %v556 = vadd.f32 %v164, %v555
    %v557 = vpop.f32.mrf.mxu0
    %v558 = vpop.f32.mrf.mxu0
    %v559 = vadd.f32 %v164, %v558
    %v560 = vpop.f32.mrf.mxu0
    %561 = vmatprep.mubr.bf16.mxu0 0
    %562 = vmatmul.mubr.bf16.gmra.mxu0 %v141
    %v563 = vpop.f32.mrf.mxu0
    %v564 = vadd.f32 %v164, %v563
    %v565 = vpop.f32.mrf.mxu0
    %v566 = vpop.f32.mrf.mxu0
    %v567 = vadd.f32 %v164, %v566
    %v568 = vpop.f32.mrf.mxu0
    %569 = vmatprep.mubr.bf16.mxu0 0
    %570 = vmatmul.mubr.bf16.gmra.mxu0 %v142
    %v571 = vpop.f32.mrf.mxu0
    %v572 = vadd.f32 %v164, %v571
    %v573 = vpop.f32.mrf.mxu0
    %v574 = vpop.f32.mrf.mxu0
    %v575 = vadd.f32 %v164, %v574
    %v576 = vpop.f32.mrf.mxu0
    %577 = vmatprep.mubr.bf16.mxu0 0
    %578 = vmatmul.mubr.bf16.gmra.mxu0 %v143
    %v579 = vpop.f32.mrf.mxu0
    %v580 = vadd.f32 %v164, %v579
    %v581 = vpop.f32.mrf.mxu0
    %v582 = vpop.f32.mrf.mxu0
    %v583 = vadd.f32 %v164, %v582
    %v584 = vpop.f32.mrf.mxu0
    %585 = vmatprep.mubr.bf16.mxu0 0
    %586 = vmatmul.mubr.bf16.gmra.mxu0 %v144
    %v587 = vpop.f32.mrf.mxu0
    %v588 = vadd.f32 %v164, %v587
    %v589 = vpop.f32.mrf.mxu0
    %v590 = vpop.f32.mrf.mxu0
    %v591 = vadd.f32 %v164, %v590
    %v592 = vpop.f32.mrf.mxu0
    %593 = vmatprep.mubr.bf16.mxu0 0
    %594 = vmatmul.mubr.bf16.gmra.mxu0 %v145
    %v595 = vpop.f32.mrf.mxu0
    %v596 = vadd.f32 %v164, %v595
    %v597 = vpop.f32.mrf.mxu0
    %v598 = vpop.f32.mrf.mxu0
    %v599 = vadd.f32 %v164, %v598
    %v600 = vpop.f32.mrf.mxu0
    %601 = vmatprep.mubr.bf16.mxu0 0
    %602 = vmatmul.mubr.bf16.gmra.mxu0 %v146
    %v603 = vpop.f32.mrf.mxu0
    %v604 = vadd.f32 %v164, %v603
    %v605 = vpop.f32.mrf.mxu0
    %v606 = vpop.f32.mrf.mxu0
    %v607 = vadd.f32 %v164, %v606
    %v608 = vpop.f32.mrf.mxu0
    %609 = vmatprep.mubr.bf16.mxu0 0
    %610 = vmatmul.mubr.bf16.gmra.mxu0 %v147
    %v611 = vpop.f32.mrf.mxu0
    %v612 = vadd.f32 %v164, %v611
    %v613 = vpop.f32.mrf.mxu0
    %v614 = vpop.f32.mrf.mxu0
    %v615 = vadd.f32 %v164, %v614
    %v616 = vpop.f32.mrf.mxu0
    %617 = vmatprep.mubr.bf16.mxu0 0
    %618 = vmatmul.mubr.bf16.gmra.mxu0 %v148
    %v619 = vpop.f32.mrf.mxu0
    %v620 = vadd.f32 %v164, %v619
    %v621 = vpop.f32.mrf.mxu0
    %v622 = vpop.f32.mrf.mxu0
    %v623 = vadd.f32 %v164, %v622
    %v624 = vpop.f32.mrf.mxu0
    %625 = vmatprep.mubr.bf16.mxu0 0
    %626 = vmatmul.mubr.bf16.gmra.mxu0 %v149
    %v627 = vpop.f32.mrf.mxu0
    %v628 = vadd.f32 %v164, %v627
    %v629 = vpop.f32.mrf.mxu0
    %v630 = vpop.f32.mrf.mxu0
    %v631 = vadd.f32 %v164, %v630
    %v632 = vpop.f32.mrf.mxu0
    %633 = vmatprep.mubr.bf16.mxu0 0
    %634 = vmatmul.mubr.bf16.gmra.mxu0 %v150
    %v635 = vpop.f32.mrf.mxu0
    %v636 = vadd.f32 %v164, %v635
    %v637 = vpop.f32.mrf.mxu0
    %v638 = vpop.f32.mrf.mxu0
    %v639 = vadd.f32 %v164, %v638
    %v640 = vpop.f32.mrf.mxu0
    %641 = vmatprep.mubr.bf16.mxu0 0
    %642 = vmatmul.mubr.bf16.gmra.mxu0 %v151
    %v643 = vpop.f32.mrf.mxu0
    %v644 = vadd.f32 %v164, %v643
    %v645 = vpop.f32.mrf.mxu0
    %v646 = vpop.f32.mrf.mxu0
    %v647 = vadd.f32 %v164, %v646
    %v648 = vpop.f32.mrf.mxu0
    %649 = vdwg.mxu0
    %v650 = vxor.u32 %v331, 2147483648
    %v651 = vxor.u32 %v335, 2147483648
    %v652 = vxor.u32 %v341, 2147483648
    %v653 = vxor.u32 %v345, 2147483648
    %v654 = vxor.u32 %v351, 2147483648
    %v655 = vxor.u32 %v355, 2147483648
    %v656 = vxor.u32 %v361, 2147483648
    %v657 = vxor.u32 %v365, 2147483648
    %v658 = vxor.u32 %v371, 2147483648
    %v659 = vxor.u32 %v375, 2147483648
    %v660 = vxor.u32 %v381, 2147483648
    %v661 = vxor.u32 %v385, 2147483648
    %v662 = vxor.u32 %v391, 2147483648
    %v663 = vxor.u32 %v395, 2147483648
    %v664 = vxor.u32 %v401, 2147483648
    %v665 = vxor.u32 %v405, 2147483648
    %v666 = vxor.u32 %v411, 2147483648
    %v667 = vxor.u32 %v415, 2147483648
    %v668 = vxor.u32 %v421, 2147483648
    %v669 = vxor.u32 %v425, 2147483648
    %v670 = vxor.u32 %v431, 2147483648
    %v671 = vxor.u32 %v435, 2147483648
    %v672 = vxor.u32 %v441, 2147483648
    %v673 = vxor.u32 %v445, 2147483648
    %v674 = vxor.u32 %v451, 2147483648
    %v675 = vxor.u32 %v455, 2147483648
    %v676 = vxor.u32 %v461, 2147483648
    %v677 = vxor.u32 %v465, 2147483648
    %v678 = vxor.u32 %v471, 2147483648
    %v679 = vxor.u32 %v475, 2147483648
    %v680 = vxor.u32 %v481, 2147483648
    %v681 = vxor.u32 %v485, 2147483648
    %v682 = vmul.f32 %v650, 1.442695
    %v683 = vpow.pop %v682
    %v684 = vmul.f32 %v651, 1.442695
    %v685 = vpow.pop %v684
    %v686 = vmul.f32 %v652, 1.442695
    %v687 = vpow.pop %v686
    %v688 = vmul.f32 %v653, 1.442695
    %v689 = vpow.pop %v688
    %v690 = vmul.f32 %v654, 1.442695
    %v691 = vpow.pop %v690
    %v692 = vmul.f32 %v655, 1.442695
    %v693 = vpow.pop %v692
    %v694 = vmul.f32 %v656, 1.442695
    %v695 = vpow.pop %v694
    %v696 = vmul.f32 %v657, 1.442695
    %v697 = vpow.pop %v696
    %v698 = vmul.f32 %v658, 1.442695
    %v699 = vpow.pop %v698
    %v700 = vmul.f32 %v659, 1.442695
    %v701 = vpow.pop %v700
    %v702 = vmul.f32 %v660, 1.442695
    %v703 = vpow.pop %v702
    %v704 = vmul.f32 %v661, 1.442695
    %v705 = vpow.pop %v704
    %v706 = vmul.f32 %v662, 1.442695
    %v707 = vpow.pop %v706
    %v708 = vmul.f32 %v663, 1.442695
    %v709 = vpow.pop %v708
    %v710 = vmul.f32 %v664, 1.442695
    %v711 = vpow.pop %v710
    %v712 = vmul.f32 %v665, 1.442695
    %v713 = vpow.pop %v712
    %v714 = vmul.f32 %v666, 1.442695
    %v715 = vpow.pop %v714
    %v716 = vmul.f32 %v667, 1.442695
    %v717 = vpow.pop %v716
    %v718 = vmul.f32 %v668, 1.442695
    %v719 = vpow.pop %v718
    %v720 = vmul.f32 %v669, 1.442695
    %v721 = vpow.pop %v720
    %v722 = vmul.f32 %v670, 1.442695
    %v723 = vpow.pop %v722
    %v724 = vmul.f32 %v671, 1.442695
    %v725 = vpow.pop %v724
    %v726 = vmul.f32 %v672, 1.442695
    %v727 = vpow.pop %v726
    %v728 = vmul.f32 %v673, 1.442695
    %v729 = vpow.pop %v728
    %v730 = vmul.f32 %v674, 1.442695
    %v731 = vpow.pop %v730
    %v732 = vmul.f32 %v675, 1.442695
    %v733 = vpow.pop %v732
    %v734 = vmul.f32 %v676, 1.442695
    %v735 = vpow.pop %v734
    %v736 = vmul.f32 %v677, 1.442695
    %v737 = vpow.pop %v736
    %v738 = vmul.f32 %v678, 1.442695
    %v739 = vpow.pop %v738
    %v740 = vmul.f32 %v679, 1.442695
    %v741 = vpow.pop %v740
    %v742 = vmul.f32 %v680, 1.442695
    %v743 = vpow.pop %v742
    %v744 = vmul.f32 %v681, 1.442695
    %v745 = vpow.pop %v744
    %v746 = vadd.f32 %v683, 1.0
    %v747 = vadd.f32 %v685, 1.0
    %v748 = vadd.f32 %v687, 1.0
    %v749 = vadd.f32 %v689, 1.0
    %v750 = vadd.f32 %v691, 1.0
    %v751 = vadd.f32 %v693, 1.0
    %v752 = vadd.f32 %v695, 1.0
    %v753 = vadd.f32 %v697, 1.0
    %v754 = vadd.f32 %v699, 1.0
    %v755 = vadd.f32 %v701, 1.0
    %v756 = vadd.f32 %v703, 1.0
    %v757 = vadd.f32 %v705, 1.0
    %v758 = vadd.f32 %v707, 1.0
    %v759 = vadd.f32 %v709, 1.0
    %v760 = vadd.f32 %v711, 1.0
    %v761 = vadd.f32 %v713, 1.0
    %v762 = vadd.f32 %v715, 1.0
    %v763 = vadd.f32 %v717, 1.0
    %v764 = vadd.f32 %v719, 1.0
    %v765 = vadd.f32 %v721, 1.0
    %v766 = vadd.f32 %v723, 1.0
    %v767 = vadd.f32 %v725, 1.0
    %v768 = vadd.f32 %v727, 1.0
    %v769 = vadd.f32 %v729, 1.0
    %v770 = vadd.f32 %v731, 1.0
    %v771 = vadd.f32 %v733, 1.0
    %v772 = vadd.f32 %v735, 1.0
    %v773 = vadd.f32 %v737, 1.0
    %v774 = vadd.f32 %v739, 1.0
    %v775 = vadd.f32 %v741, 1.0
    %v776 = vadd.f32 %v743, 1.0
    %v777 = vadd.f32 %v745, 1.0
    %v778 = vrcp.pop %v746
    %v779 = vmul.f32 1.0, %v778
    %v780 = vrcp.pop %v747
    %v781 = vmul.f32 1.0, %v780
    %v782 = vrcp.pop %v748
    %v783 = vmul.f32 1.0, %v782
    %v784 = vrcp.pop %v749
    %v785 = vmul.f32 1.0, %v784
    %v786 = vrcp.pop %v750
    %v787 = vmul.f32 1.0, %v786
    %v788 = vrcp.pop %v751
    %v789 = vmul.f32 1.0, %v788
    %v790 = vrcp.pop %v752
    %v791 = vmul.f32 1.0, %v790
    %v792 = vrcp.pop %v753
    %v793 = vmul.f32 1.0, %v792
    %v794 = vrcp.pop %v754
    %v795 = vmul.f32 1.0, %v794
    %v796 = vrcp.pop %v755
    %v797 = vmul.f32 1.0, %v796
    %v798 = vrcp.pop %v756
    %v799 = vmul.f32 1.0, %v798
    %v800 = vrcp.pop %v757
    %v801 = vmul.f32 1.0, %v800
    %v802 = vrcp.pop %v758
    %v803 = vmul.f32 1.0, %v802
    %v804 = vrcp.pop %v759
    %v805 = vmul.f32 1.0, %v804
    %v806 = vrcp.pop %v760
    %v807 = vmul.f32 1.0, %v806
    %v808 = vrcp.pop %v761
    %v809 = vmul.f32 1.0, %v808
    %v810 = vrcp.pop %v762
    %v811 = vmul.f32 1.0, %v810
    %v812 = vrcp.pop %v763
    %v813 = vmul.f32 1.0, %v812
    %v814 = vrcp.pop %v764
    %v815 = vmul.f32 1.0, %v814
    %v816 = vrcp.pop %v765
    %v817 = vmul.f32 1.0, %v816
    %v818 = vrcp.pop %v766
    %v819 = vmul.f32 1.0, %v818
    %v820 = vrcp.pop %v767
    %v821 = vmul.f32 1.0, %v820
    %v822 = vrcp.pop %v768
    %v823 = vmul.f32 1.0, %v822
    %v824 = vrcp.pop %v769
    %v825 = vmul.f32 1.0, %v824
    %v826 = vrcp.pop %v770
    %v827 = vmul.f32 1.0, %v826
    %v828 = vrcp.pop %v771
    %v829 = vmul.f32 1.0, %v828
    %v830 = vrcp.pop %v772
    %v831 = vmul.f32 1.0, %v830
    %v832 = vrcp.pop %v773
    %v833 = vmul.f32 1.0, %v832
    %v834 = vrcp.pop %v774
    %v835 = vmul.f32 1.0, %v834
    %v836 = vrcp.pop %v775
    %v837 = vmul.f32 1.0, %v836
    %v838 = vrcp.pop %v776
    %v839 = vmul.f32 1.0, %v838
    %v840 = vrcp.pop %v777
    %v841 = vmul.f32 1.0, %v840
    %v842 = vtanh.pop %v333
    %v843 = vtanh.pop %v337
    %v844 = vtanh.pop %v343
    %v845 = vtanh.pop %v347
    %v846 = vtanh.pop %v353
    %v847 = vtanh.pop %v357
    %v848 = vtanh.pop %v363
    %v849 = vtanh.pop %v367
    %v850 = vtanh.pop %v373
    %v851 = vtanh.pop %v377
    %v852 = vtanh.pop %v383
    %v853 = vtanh.pop %v387
    %v854 = vtanh.pop %v393
    %v855 = vtanh.pop %v397
    %v856 = vtanh.pop %v403
    %v857 = vtanh.pop %v407
    %v858 = vtanh.pop %v413
    %v859 = vtanh.pop %v417
    %v860 = vtanh.pop %v423
    %v861 = vtanh.pop %v427
    %v862 = vtanh.pop %v433
    %v863 = vtanh.pop %v437
    %v864 = vtanh.pop %v443
    %v865 = vtanh.pop %v447
    %v866 = vtanh.pop %v453
    %v867 = vtanh.pop %v457
    %v868 = vtanh.pop %v463
    %v869 = vtanh.pop %v467
    %v870 = vtanh.pop %v473
    %v871 = vtanh.pop %v477
    %v872 = vtanh.pop %v483
    %v873 = vtanh.pop %v487
    %v874 = vxor.u32 %v524, 2147483648
    %v875 = vxor.u32 %v527, 2147483648
    %v876 = vxor.u32 %v532, 2147483648
    %v877 = vxor.u32 %v535, 2147483648
    %v878 = vxor.u32 %v540, 2147483648
    %v879 = vxor.u32 %v543, 2147483648
    %v880 = vxor.u32 %v548, 2147483648
    %v881 = vxor.u32 %v551, 2147483648
    %v882 = vxor.u32 %v556, 2147483648
    %v883 = vxor.u32 %v559, 2147483648
    %v884 = vxor.u32 %v564, 2147483648
    %v885 = vxor.u32 %v567, 2147483648
    %v886 = vxor.u32 %v572, 2147483648
    %v887 = vxor.u32 %v575, 2147483648
    %v888 = vxor.u32 %v580, 2147483648
    %v889 = vxor.u32 %v583, 2147483648
    %v890 = vxor.u32 %v588, 2147483648
    %v891 = vxor.u32 %v591, 2147483648
    %v892 = vxor.u32 %v596, 2147483648
    %v893 = vxor.u32 %v599, 2147483648
    %v894 = vxor.u32 %v604, 2147483648
    %v895 = vxor.u32 %v607, 2147483648
    %v896 = vxor.u32 %v612, 2147483648
    %v897 = vxor.u32 %v615, 2147483648
    %v898 = vxor.u32 %v620, 2147483648
    %v899 = vxor.u32 %v623, 2147483648
    %v900 = vxor.u32 %v628, 2147483648
    %v901 = vxor.u32 %v631, 2147483648
    %v902 = vxor.u32 %v636, 2147483648
    %v903 = vxor.u32 %v639, 2147483648
    %v904 = vxor.u32 %v644, 2147483648
    %v905 = vxor.u32 %v647, 2147483648
    %v906 = vmul.f32 %v874, 1.442695
    %v907 = vpow.pop %v906
    %v908 = vmul.f32 %v875, 1.442695
    %v909 = vpow.pop %v908
    %v910 = vmul.f32 %v876, 1.442695
    %v911 = vpow.pop %v910
    %v912 = vmul.f32 %v877, 1.442695
    %v913 = vpow.pop %v912
    %v914 = vmul.f32 %v878, 1.442695
    %v915 = vpow.pop %v914
    %v916 = vmul.f32 %v879, 1.442695
    %v917 = vpow.pop %v916
    %v918 = vmul.f32 %v880, 1.442695
    %v919 = vpow.pop %v918
    %v920 = vmul.f32 %v881, 1.442695
    %v921 = vpow.pop %v920
    %v922 = vmul.f32 %v882, 1.442695
    %v923 = vpow.pop %v922
    %v924 = vmul.f32 %v883, 1.442695
    %v925 = vpow.pop %v924
    %v926 = vmul.f32 %v884, 1.442695
    %v927 = vpow.pop %v926
    %v928 = vmul.f32 %v885, 1.442695
    %v929 = vpow.pop %v928
    %v930 = vmul.f32 %v886, 1.442695
    %v931 = vpow.pop %v930
    %v932 = vmul.f32 %v887, 1.442695
    %v933 = vpow.pop %v932
    %v934 = vmul.f32 %v888, 1.442695
    %v935 = vpow.pop %v934
    %v936 = vmul.f32 %v889, 1.442695
    %v937 = vpow.pop %v936
    %v938 = vmul.f32 %v890, 1.442695
    %v939 = vpow.pop %v938
    %v940 = vmul.f32 %v891, 1.442695
    %v941 = vpow.pop %v940
    %v942 = vmul.f32 %v892, 1.442695
    %v943 = vpow.pop %v942
    %v944 = vmul.f32 %v893, 1.442695
    %v945 = vpow.pop %v944
    %v946 = vmul.f32 %v894, 1.442695
    %v947 = vpow.pop %v946
    %v948 = vmul.f32 %v895, 1.442695
    %v949 = vpow.pop %v948
    %v950 = vmul.f32 %v896, 1.442695
    %v951 = vpow.pop %v950
    %v952 = vmul.f32 %v897, 1.442695
    %v953 = vpow.pop %v952
    %v954 = vmul.f32 %v898, 1.442695
    %v955 = vpow.pop %v954
    %v956 = vmul.f32 %v899, 1.442695
    %v957 = vpow.pop %v956
    %v958 = vmul.f32 %v900, 1.442695
    %v959 = vpow.pop %v958
    %v960 = vmul.f32 %v901, 1.442695
    %v961 = vpow.pop %v960
    %v962 = vmul.f32 %v902, 1.442695
    %v963 = vpow.pop %v962
    %v964 = vmul.f32 %v903, 1.442695
    %v965 = vpow.pop %v964
    %v966 = vmul.f32 %v904, 1.442695
    %v967 = vpow.pop %v966
    %v968 = vmul.f32 %v905, 1.442695
    %v969 = vpow.pop %v968
    %v970 = vadd.f32 %v907, 1.0
    %v971 = vadd.f32 %v909, 1.0
    %v972 = vadd.f32 %v911, 1.0
    %v973 = vadd.f32 %v913, 1.0
    %v974 = vadd.f32 %v915, 1.0
    %v975 = vadd.f32 %v917, 1.0
    %v976 = vadd.f32 %v919, 1.0
    %v977 = vadd.f32 %v921, 1.0
    %v978 = vadd.f32 %v923, 1.0
    %v979 = vadd.f32 %v925, 1.0
    %v980 = vadd.f32 %v927, 1.0
    %v981 = vadd.f32 %v929, 1.0
    %v982 = vadd.f32 %v931, 1.0
    %v983 = vadd.f32 %v933, 1.0
    %v984 = vadd.f32 %v935, 1.0
    %v985 = vadd.f32 %v937, 1.0
    %v986 = vadd.f32 %v939, 1.0
    %v987 = vadd.f32 %v941, 1.0
    %v988 = vadd.f32 %v943, 1.0
    %v989 = vadd.f32 %v945, 1.0
    %v990 = vadd.f32 %v947, 1.0
    %v991 = vadd.f32 %v949, 1.0
    %v992 = vadd.f32 %v951, 1.0
    %v993 = vadd.f32 %v953, 1.0
    %v994 = vadd.f32 %v955, 1.0
    %v995 = vadd.f32 %v957, 1.0
    %v996 = vadd.f32 %v959, 1.0
    %v997 = vadd.f32 %v961, 1.0
    %v998 = vadd.f32 %v963, 1.0
    %v999 = vadd.f32 %v965, 1.0
    %v1000 = vadd.f32 %v967, 1.0
    %v1001 = vadd.f32 %v969, 1.0
    %v1002 = vrcp.pop %v970
    %v1003 = vmul.f32 1.0, %v1002
    %v1004 = vrcp.pop %v971
    %v1005 = vmul.f32 1.0, %v1004
    %v1006 = vrcp.pop %v972
    %v1007 = vmul.f32 1.0, %v1006
    %v1008 = vrcp.pop %v973
    %v1009 = vmul.f32 1.0, %v1008
    %v1010 = vrcp.pop %v974
    %v1011 = vmul.f32 1.0, %v1010
    %v1012 = vrcp.pop %v975
    %v1013 = vmul.f32 1.0, %v1012
    %v1014 = vrcp.pop %v976
    %v1015 = vmul.f32 1.0, %v1014
    %v1016 = vrcp.pop %v977
    %v1017 = vmul.f32 1.0, %v1016
    %v1018 = vrcp.pop %v978
    %v1019 = vmul.f32 1.0, %v1018
    %v1020 = vrcp.pop %v979
    %v1021 = vmul.f32 1.0, %v1020
    %v1022 = vrcp.pop %v980
    %v1023 = vmul.f32 1.0, %v1022
    %v1024 = vrcp.pop %v981
    %v1025 = vmul.f32 1.0, %v1024
    %v1026 = vrcp.pop %v982
    %v1027 = vmul.f32 1.0, %v1026
    %v1028 = vrcp.pop %v983
    %v1029 = vmul.f32 1.0, %v1028
    %v1030 = vrcp.pop %v984
    %v1031 = vmul.f32 1.0, %v1030
    %v1032 = vrcp.pop %v985
    %v1033 = vmul.f32 1.0, %v1032
    %v1034 = vrcp.pop %v986
    %v1035 = vmul.f32 1.0, %v1034
    %v1036 = vrcp.pop %v987
    %v1037 = vmul.f32 1.0, %v1036
    %v1038 = vrcp.pop %v988
    %v1039 = vmul.f32 1.0, %v1038
    %v1040 = vrcp.pop %v989
    %v1041 = vmul.f32 1.0, %v1040
    %v1042 = vrcp.pop %v990
    %v1043 = vmul.f32 1.0, %v1042
    %v1044 = vrcp.pop %v991
    %v1045 = vmul.f32 1.0, %v1044
    %v1046 = vrcp.pop %v992
    %v1047 = vmul.f32 1.0, %v1046
    %v1048 = vrcp.pop %v993
    %v1049 = vmul.f32 1.0, %v1048
    %v1050 = vrcp.pop %v994
    %v1051 = vmul.f32 1.0, %v1050
    %v1052 = vrcp.pop %v995
    %v1053 = vmul.f32 1.0, %v1052
    %v1054 = vrcp.pop %v996
    %v1055 = vmul.f32 1.0, %v1054
    %v1056 = vrcp.pop %v997
    %v1057 = vmul.f32 1.0, %v1056
    %v1058 = vrcp.pop %v998
    %v1059 = vmul.f32 1.0, %v1058
    %v1060 = vrcp.pop %v999
    %v1061 = vmul.f32 1.0, %v1060
    %v1062 = vrcp.pop %v1000
    %v1063 = vmul.f32 1.0, %v1062
    %v1064 = vrcp.pop %v1001
    %v1065 = vmul.f32 1.0, %v1064
    %v1066 = vmul.f32 %v779, %v842
    %v1067 = vmul.f32 %v781, %v843
    %v1068 = vmul.f32 %v783, %v844
    %v1069 = vmul.f32 %v785, %v845
    %v1070 = vmul.f32 %v787, %v846
    %v1071 = vmul.f32 %v789, %v847
    %v1072 = vmul.f32 %v791, %v848
    %v1073 = vmul.f32 %v793, %v849
    %v1074 = vmul.f32 %v795, %v850
    %v1075 = vmul.f32 %v797, %v851
    %v1076 = vmul.f32 %v799, %v852
    %v1077 = vmul.f32 %v801, %v853
    %v1078 = vmul.f32 %v803, %v854
    %v1079 = vmul.f32 %v805, %v855
    %v1080 = vmul.f32 %v807, %v856
    %v1081 = vmul.f32 %v809, %v857
    %v1082 = vmul.f32 %v811, %v858
    %v1083 = vmul.f32 %v813, %v859
    %v1084 = vmul.f32 %v815, %v860
    %v1085 = vmul.f32 %v817, %v861
    %v1086 = vmul.f32 %v819, %v862
    %v1087 = vmul.f32 %v821, %v863
    %v1088 = vmul.f32 %v823, %v864
    %v1089 = vmul.f32 %v825, %v865
    %v1090 = vmul.f32 %v827, %v866
    %v1091 = vmul.f32 %v829, %v867
    %v1092 = vmul.f32 %v831, %v868
    %v1093 = vmul.f32 %v833, %v869
    %v1094 = vmul.f32 %v835, %v870
    %v1095 = vmul.f32 %v837, %v871
    %v1096 = vmul.f32 %v839, %v872
    %v1097 = vmul.f32 %v841, %v873
    %v1098 = vtanh.pop %v1066
    %v1099 = vtanh.pop %v1067
    %v1100 = vtanh.pop %v1068
    %v1101 = vtanh.pop %v1069
    %v1102 = vtanh.pop %v1070
    %v1103 = vtanh.pop %v1071
    %v1104 = vtanh.pop %v1072
    %v1105 = vtanh.pop %v1073
    %v1106 = vtanh.pop %v1074
    %v1107 = vtanh.pop %v1075
    %v1108 = vtanh.pop %v1076
    %v1109 = vtanh.pop %v1077
    %v1110 = vtanh.pop %v1078
    %v1111 = vtanh.pop %v1079
    %v1112 = vtanh.pop %v1080
    %v1113 = vtanh.pop %v1081
    %v1114 = vtanh.pop %v1082
    %v1115 = vtanh.pop %v1083
    %v1116 = vtanh.pop %v1084
    %v1117 = vtanh.pop %v1085
    %v1118 = vtanh.pop %v1086
    %v1119 = vtanh.pop %v1087
    %v1120 = vtanh.pop %v1088
    %v1121 = vtanh.pop %v1089
    %v1122 = vtanh.pop %v1090
    %v1123 = vtanh.pop %v1091
    %v1124 = vtanh.pop %v1092
    %v1125 = vtanh.pop %v1093
    %v1126 = vtanh.pop %v1094
    %v1127 = vtanh.pop %v1095
    %v1128 = vtanh.pop %v1096
    %v1129 = vtanh.pop %v1097
    %v1130 = vmul.f32 %v1003, %v1098
    %v1131 = vmul.f32 %v1005, %v1099
    %v1132 = vmul.f32 %v1007, %v1100
    %v1133 = vmul.f32 %v1009, %v1101
    %v1134 = vmul.f32 %v1011, %v1102
    %v1135 = vmul.f32 %v1013, %v1103
    %v1136 = vmul.f32 %v1015, %v1104
    %v1137 = vmul.f32 %v1017, %v1105
    %v1138 = vmul.f32 %v1019, %v1106
    %v1139 = vmul.f32 %v1021, %v1107
    %v1140 = vmul.f32 %v1023, %v1108
    %v1141 = vmul.f32 %v1025, %v1109
    %v1142 = vmul.f32 %v1027, %v1110
    %v1143 = vmul.f32 %v1029, %v1111
    %v1144 = vmul.f32 %v1031, %v1112
    %v1145 = vmul.f32 %v1033, %v1113
    %v1146 = vmul.f32 %v1035, %v1114
    %v1147 = vmul.f32 %v1037, %v1115
    %v1148 = vmul.f32 %v1039, %v1116
    %v1149 = vmul.f32 %v1041, %v1117
    %v1150 = vmul.f32 %v1043, %v1118
    %v1151 = vmul.f32 %v1045, %v1119
    %v1152 = vmul.f32 %v1047, %v1120
    %v1153 = vmul.f32 %v1049, %v1121
    %v1154 = vmul.f32 %v1051, %v1122
    %v1155 = vmul.f32 %v1053, %v1123
    %v1156 = vmul.f32 %v1055, %v1124
    %v1157 = vmul.f32 %v1057, %v1125
    %v1158 = vmul.f32 %v1059, %v1126
    %v1159 = vmul.f32 %v1061, %v1127
    %v1160 = vmul.f32 %v1063, %v1128
    %v1161 = vmul.f32 %v1065, %v1129
    %v1162 = vld [vmem:[#allocation8] sm:$0xff]
    %v1163 = vld [vmem:[#allocation8 + $0x8] sm:$0xf]
    %v1164 = vld [vmem:[#allocation8 + $0xc] sm:$0xff]
    %v1165 = vld [vmem:[#allocation8 + $0x14] sm:$0xf]
    %v1166 = vld [vmem:[#allocation8 + $0x18] sm:$0xff]
    %v1167 = vld [vmem:[#allocation8 + $0x20] sm:$0xf]
    %v1168 = vld [vmem:[#allocation8 + $0x24] sm:$0xff]
    %v1169 = vld [vmem:[#allocation8 + $0x2c] sm:$0xf]
    %v1170 = vld [vmem:[#allocation8 + $0x30] sm:$0xff]
    %v1171 = vld [vmem:[#allocation8 + $0x38] sm:$0xf]
    %v1172 = vld [vmem:[#allocation8 + $0x3c] sm:$0xff]
    %v1173 = vld [vmem:[#allocation8 + $0x44] sm:$0xf]
    %v1174 = vld [vmem:[#allocation8 + $0x48] sm:$0xff]
    %v1175 = vld [vmem:[#allocation8 + $0x50] sm:$0xf]
    %v1176 = vld [vmem:[#allocation8 + $0x54] sm:$0xff]
    %v1177 = vld [vmem:[#allocation8 + $0x5c] sm:$0xf]
    %v1178 = vld [vmem:[#allocation8 + $0x60] sm:$0xff]
    %v1179 = vld [vmem:[#allocation8 + $0x68] sm:$0xf]
    %v1180 = vld [vmem:[#allocation8 + $0x6c] sm:$0xff]
    %v1181 = vld [vmem:[#allocation8 + $0x74] sm:$0xf]
    %v1182 = vld [vmem:[#allocation8 + $0x78] sm:$0xff]
    %v1183 = vld [vmem:[#allocation8 + $0x80] sm:$0xf]
    %v1184 = vld [vmem:[#allocation8 + $0x84] sm:$0xff]
    %v1185 = vld [vmem:[#allocation8 + $0x8c] sm:$0xf]
    %v1186 = vld [vmem:[#allocation8 + $0x90] sm:$0xff]
    %v1187 = vld [vmem:[#allocation8 + $0x98] sm:$0xf]
    %v1188 = vld [vmem:[#allocation8 + $0x9c] sm:$0xff]
    %v1189 = vld [vmem:[#allocation8 + $0xa4] sm:$0xf]
    %v1190 = vld [vmem:[#allocation8 + $0xa8] sm:$0xff]
    %v1191 = vld [vmem:[#allocation8 + $0xb0] sm:$0xf]
    %v1192 = vld [vmem:[#allocation8 + $0xb4] sm:$0xff]
    %v1193 = vld [vmem:[#allocation8 + $0xbc] sm:$0xf]
    %v1194 = vld [vmem:[%s4] sm:$0x7]
    %v1195 = vpack.c.bf16 %v1131, %v1130
    %v1196 = vpack.c.bf16 %v1133, %v1132
    %v1197 = vpack.c.bf16 %v1135, %v1134
    %v1198 = vpack.c.bf16 %v1137, %v1136
    %v1199 = vpack.c.bf16 %v1139, %v1138
    %v1200 = vpack.c.bf16 %v1141, %v1140
    %v1201 = vpack.c.bf16 %v1143, %v1142
    %v1202 = vpack.c.bf16 %v1145, %v1144
    %v1203 = vpack.c.bf16 %v1147, %v1146
    %v1204 = vpack.c.bf16 %v1149, %v1148
    %v1205 = vpack.c.bf16 %v1151, %v1150
    %v1206 = vpack.c.bf16 %v1153, %v1152
    %v1207 = vpack.c.bf16 %v1155, %v1154
    %v1208 = vpack.c.bf16 %v1157, %v1156
    %v1209 = vpack.c.bf16 %v1159, %v1158
    %v1210 = vpack.c.bf16 %v1161, %v1160
    %v1212 = vlaneseq
    %v1213 = vshrl.u32 %v1212, 7
    %v1214 = vsub.s32 0, %v1213
    %v1215 = vrot.slane %v1194, %v1214
    %v1216 = vlaneseq
    %v1217 = vshrl.u32 %v1216, 7
    %v1218 = vsub.s32 1, %v1217
    %v1219 = vrot.slane %v1194, %v1218
    %v1220 = vlaneseq
    %v1221 = vshrl.u32 %v1220, 7
    %v1222 = vsub.s32 2, %v1221
    %v1223 = vrot.slane %v1194, %v1222
    %v1259 = vunpack.c.l.b16 %v1162
    %v1260 = vunpack.c.h.b16 %v1162
    %v1261 = vunpack.c.l.b16 %v1163
    %v1262 = vunpack.c.l.b16 %v1164
    %v1263 = vunpack.c.h.b16 %v1164
    %v1264 = vunpack.c.l.b16 %v1165
    %v1265 = vunpack.c.l.b16 %v1166
    %v1266 = vunpack.c.h.b16 %v1166
    %v1267 = vunpack.c.l.b16 %v1167
    %v1268 = vunpack.c.l.b16 %v1168
    %v1269 = vunpack.c.h.b16 %v1168
    %v1270 = vunpack.c.l.b16 %v1169
    %v1271 = vunpack.c.l.b16 %v1170
    %v1272 = vunpack.c.h.b16 %v1170
    %v1273 = vunpack.c.l.b16 %v1171
    %v1274 = vunpack.c.l.b16 %v1172
    %v1275 = vunpack.c.h.b16 %v1172
    %v1276 = vunpack.c.l.b16 %v1173
    %v1277 = vunpack.c.l.b16 %v1174
    %v1278 = vunpack.c.h.b16 %v1174
    %v1279 = vunpack.c.l.b16 %v1175
    %v1280 = vunpack.c.l.b16 %v1176
    %v1281 = vunpack.c.h.b16 %v1176
    %v1282 = vunpack.c.l.b16 %v1177
    %v1283 = vunpack.c.l.b16 %v1178
    %v1284 = vunpack.c.h.b16 %v1178
    %v1285 = vunpack.c.l.b16 %v1179
    %v1286 = vunpack.c.l.b16 %v1180
    %v1287 = vunpack.c.h.b16 %v1180
    %v1288 = vunpack.c.l.b16 %v1181
    %v1289 = vunpack.c.l.b16 %v1182
    %v1290 = vunpack.c.h.b16 %v1182
    %v1291 = vunpack.c.l.b16 %v1183
    %v1292 = vunpack.c.l.b16 %v1184
    %v1293 = vunpack.c.h.b16 %v1184
    %v1294 = vunpack.c.l.b16 %v1185
    %v1295 = vunpack.c.l.b16 %v1186
    %v1296 = vunpack.c.h.b16 %v1186
    %v1297 = vunpack.c.l.b16 %v1187
    %v1298 = vunpack.c.l.b16 %v1188
    %v1299 = vunpack.c.h.b16 %v1188
    %v1300 = vunpack.c.l.b16 %v1189
    %v1301 = vunpack.c.l.b16 %v1190
    %v1302 = vunpack.c.h.b16 %v1190
    %v1303 = vunpack.c.l.b16 %v1191
    %v1304 = vunpack.c.l.b16 %v1192
    %v1305 = vunpack.c.h.b16 %v1192
    %v1306 = vunpack.c.l.b16 %v1193
    %v1307 = vpack.c.b16 %v1262, %v1259
    %v1308 = vpack.c.b16 %v1263, %v1260
    %v1309 = vpack.c.b16 %v1264, %v1261
    %v1310 = vpack.c.b16 %v1268, %v1265
    %v1311 = vpack.c.b16 %v1269, %v1266
    %v1312 = vpack.c.b16 %v1270, %v1267
    %v1313 = vpack.c.b16 %v1274, %v1271
    %v1314 = vpack.c.b16 %v1275, %v1272
    %v1315 = vpack.c.b16 %v1276, %v1273
    %v1316 = vpack.c.b16 %v1280, %v1277
    %v1317 = vpack.c.b16 %v1281, %v1278
    %v1318 = vpack.c.b16 %v1282, %v1279
    %v1319 = vpack.c.b16 %v1286, %v1283
    %v1320 = vpack.c.b16 %v1287, %v1284
    %v1321 = vpack.c.b16 %v1288, %v1285
    %v1322 = vpack.c.b16 %v1292, %v1289
    %v1323 = vpack.c.b16 %v1293, %v1290
    %v1324 = vpack.c.b16 %v1294, %v1291
    %v1325 = vpack.c.b16 %v1298, %v1295
    %v1326 = vpack.c.b16 %v1299, %v1296
    %v1327 = vpack.c.b16 %v1300, %v1297
    %v1328 = vpack.c.b16 %v1304, %v1301
    %v1329 = vpack.c.b16 %v1305, %v1302
    %v1330 = vpack.c.b16 %v1306, %v1303
    %1355 = vmatprep.subr.bf16.mxu0 %v1329
    %1356 = vmatpush1.bf16.msra.mxu0 %v1328
    %1357 = vmatprep.subr.bf16.mxu0 %v1326
    %1358 = vmatpush1.bf16.msra.mxu0 %v1325
    %1359 = vmatprep.subr.bf16.mxu0 %v1323
    %1360 = vmatpush1.bf16.msra.mxu0 %v1322
    %1361 = vmatprep.subr.bf16.mxu0 %v1320
    %1362 = vmatpush1.bf16.msra.mxu0 %v1319
    %1363 = vmatprep.subr.bf16.mxu0 %v1317
    %1364 = vmatpush1.bf16.msra.mxu0 %v1316
    %1365 = vmatprep.subr.bf16.mxu0 %v1314
    %1366 = vmatpush1.bf16.msra.mxu0 %v1313
    %1367 = vmatprep.subr.bf16.mxu0 %v1311
    %1368 = vmatpush1.bf16.msra.mxu0 %v1310
    %1369 = vmatprep.subr.bf16.mxu0 %v1308
    %1370 = vmatpush1.bf16.msra.mxu0 %v1307
    %1371 = vmatprep.subr.bf16.mxu0 0
    %1372 = vmatpush2.bf16.msra.mxu0 0
    %1373 = vmatprep.subr.bf16.mxu0 0
    %1374 = vmatpush2.bf16.msra.mxu0 0
    %1375 = vmatprep.subr.bf16.mxu0 0
    %1376 = vmatpush2.bf16.msra.mxu0 0
    %1377 = vmatprep.subr.bf16.mxu0 0
    %1378 = vmatpush2.bf16.msra.mxu0 0
    %1379 = vmatprep.subr.bf16.mxu0 0
    %1380 = vmatpush2.bf16.msra.mxu0 0
    %1381 = vmatprep.subr.bf16.mxu0 0
    %1382 = vmatpush2.bf16.msra.mxu0 0
    %1383 = vmatprep.subr.bf16.mxu0 0
    %1384 = vmatpush2.bf16.msra.mxu0 0
    %1385 = vmatprep.subr.bf16.mxu0 0
    %1386 = vmatpush2.bf16.msra.mxu0 0
    %1387 = vmatprep.mubr.bf16.mxu0 0
    %1388 = vmatmul.mubr.bf16.gmra.mxu0 %v1195
    %v1389 = vpop.f32.mrf.mxu0
    %v1390 = vadd.f32 %v1215, %v1389
    %v1391 = vpop.f32.mrf.mxu0
    %v1392 = vadd.f32 %v1219, %v1391
    %v1393 = vpop.f32.mrf.mxu0
    %v1394 = vadd.f32 %v1215, %v1393
    %v1395 = vpop.f32.mrf.mxu0
    %v1396 = vadd.f32 %v1219, %v1395
    %1397 = vmatprep.mubr.bf16.mxu0 0
    %1398 = vmatmul.mubr.bf16.gmra.mxu0 %v1196
    %v1399 = vpop.f32.mrf.mxu0
    %v1400 = vadd.f32 %v1215, %v1399
    %v1401 = vpop.f32.mrf.mxu0
    %v1402 = vadd.f32 %v1219, %v1401
    %v1403 = vpop.f32.mrf.mxu0
    %v1404 = vadd.f32 %v1215, %v1403
    %v1405 = vpop.f32.mrf.mxu0
    %v1406 = vadd.f32 %v1219, %v1405
    %1407 = vmatprep.mubr.bf16.mxu0 0
    %1408 = vmatmul.mubr.bf16.gmra.mxu0 %v1197
    %v1409 = vpop.f32.mrf.mxu0
    %v1410 = vadd.f32 %v1215, %v1409
    %v1411 = vpop.f32.mrf.mxu0
    %v1412 = vadd.f32 %v1219, %v1411
    %v1413 = vpop.f32.mrf.mxu0
    %v1414 = vadd.f32 %v1215, %v1413
    %v1415 = vpop.f32.mrf.mxu0
    %v1416 = vadd.f32 %v1219, %v1415
    %1417 = vmatprep.mubr.bf16.mxu0 0
    %1418 = vmatmul.mubr.bf16.gmra.mxu0 %v1198
    %v1419 = vpop.f32.mrf.mxu0
    %v1420 = vadd.f32 %v1215, %v1419
    %v1421 = vpop.f32.mrf.mxu0
    %v1422 = vadd.f32 %v1219, %v1421
    %v1423 = vpop.f32.mrf.mxu0
    %v1424 = vadd.f32 %v1215, %v1423
    %v1425 = vpop.f32.mrf.mxu0
    %v1426 = vadd.f32 %v1219, %v1425
    %1427 = vmatprep.mubr.bf16.mxu0 0
    %1428 = vmatmul.mubr.bf16.gmra.mxu0 %v1199
    %v1429 = vpop.f32.mrf.mxu0
    %v1430 = vadd.f32 %v1215, %v1429
    %v1431 = vpop.f32.mrf.mxu0
    %v1432 = vadd.f32 %v1219, %v1431
    %v1433 = vpop.f32.mrf.mxu0
    %v1434 = vadd.f32 %v1215, %v1433
    %v1435 = vpop.f32.mrf.mxu0
    %v1436 = vadd.f32 %v1219, %v1435
    %1437 = vmatprep.mubr.bf16.mxu0 0
    %1438 = vmatmul.mubr.bf16.gmra.mxu0 %v1200
    %v1439 = vpop.f32.mrf.mxu0
    %v1440 = vadd.f32 %v1215, %v1439
    %v1441 = vpop.f32.mrf.mxu0
    %v1442 = vadd.f32 %v1219, %v1441
    %v1443 = vpop.f32.mrf.mxu0
    %v1444 = vadd.f32 %v1215, %v1443
    %v1445 = vpop.f32.mrf.mxu0
    %v1446 = vadd.f32 %v1219, %v1445
    %1447 = vmatprep.mubr.bf16.mxu0 0
    %1448 = vmatmul.mubr.bf16.gmra.mxu0 %v1201
    %v1449 = vpop.f32.mrf.mxu0
    %v1450 = vadd.f32 %v1215, %v1449
    %v1451 = vpop.f32.mrf.mxu0
    %v1452 = vadd.f32 %v1219, %v1451
    %v1453 = vpop.f32.mrf.mxu0
    %v1454 = vadd.f32 %v1215, %v1453
    %v1455 = vpop.f32.mrf.mxu0
    %v1456 = vadd.f32 %v1219, %v1455
    %1457 = vmatprep.mubr.bf16.mxu0 0
    %1458 = vmatmul.mubr.bf16.gmra.mxu0 %v1202
    %v1459 = vpop.f32.mrf.mxu0
    %v1460 = vadd.f32 %v1215, %v1459
    %v1461 = vpop.f32.mrf.mxu0
    %v1462 = vadd.f32 %v1219, %v1461
    %v1463 = vpop.f32.mrf.mxu0
    %v1464 = vadd.f32 %v1215, %v1463
    %v1465 = vpop.f32.mrf.mxu0
    %v1466 = vadd.f32 %v1219, %v1465
    %1467 = vmatprep.mubr.bf16.mxu0 0
    %1468 = vmatmul.mubr.bf16.gmra.mxu0 %v1203
    %v1469 = vpop.f32.mrf.mxu0
    %v1470 = vadd.f32 %v1215, %v1469
    %v1471 = vpop.f32.mrf.mxu0
    %v1472 = vadd.f32 %v1219, %v1471
    %v1473 = vpop.f32.mrf.mxu0
    %v1474 = vadd.f32 %v1215, %v1473
    %v1475 = vpop.f32.mrf.mxu0
    %v1476 = vadd.f32 %v1219, %v1475
    %1477 = vmatprep.mubr.bf16.mxu0 0
    %1478 = vmatmul.mubr.bf16.gmra.mxu0 %v1204
    %v1479 = vpop.f32.mrf.mxu0
    %v1480 = vadd.f32 %v1215, %v1479
    %v1481 = vpop.f32.mrf.mxu0
    %v1482 = vadd.f32 %v1219, %v1481
    %v1483 = vpop.f32.mrf.mxu0
    %v1484 = vadd.f32 %v1215, %v1483
    %v1485 = vpop.f32.mrf.mxu0
    %v1486 = vadd.f32 %v1219, %v1485
    %1487 = vmatprep.mubr.bf16.mxu0 0
    %1488 = vmatmul.mubr.bf16.gmra.mxu0 %v1205
    %v1489 = vpop.f32.mrf.mxu0
    %v1490 = vadd.f32 %v1215, %v1489
    %v1491 = vpop.f32.mrf.mxu0
    %v1492 = vadd.f32 %v1219, %v1491
    %v1493 = vpop.f32.mrf.mxu0
    %v1494 = vadd.f32 %v1215, %v1493
    %v1495 = vpop.f32.mrf.mxu0
    %v1496 = vadd.f32 %v1219, %v1495
    %1497 = vmatprep.mubr.bf16.mxu0 0
    %1498 = vmatmul.mubr.bf16.gmra.mxu0 %v1206
    %v1499 = vpop.f32.mrf.mxu0
    %v1500 = vadd.f32 %v1215, %v1499
    %v1501 = vpop.f32.mrf.mxu0
    %v1502 = vadd.f32 %v1219, %v1501
    %v1503 = vpop.f32.mrf.mxu0
    %v1504 = vadd.f32 %v1215, %v1503
    %v1505 = vpop.f32.mrf.mxu0
    %v1506 = vadd.f32 %v1219, %v1505
    %1507 = vmatprep.mubr.bf16.mxu0 0
    %1508 = vmatmul.mubr.bf16.gmra.mxu0 %v1207
    %v1509 = vpop.f32.mrf.mxu0
    %v1510 = vadd.f32 %v1215, %v1509
    %v1511 = vpop.f32.mrf.mxu0
    %v1512 = vadd.f32 %v1219, %v1511
    %v1513 = vpop.f32.mrf.mxu0
    %v1514 = vadd.f32 %v1215, %v1513
    %v1515 = vpop.f32.mrf.mxu0
    %v1516 = vadd.f32 %v1219, %v1515
    %1517 = vmatprep.mubr.bf16.mxu0 0
    %1518 = vmatmul.mubr.bf16.gmra.mxu0 %v1208
    %v1519 = vpop.f32.mrf.mxu0
    %v1520 = vadd.f32 %v1215, %v1519
    %v1521 = vpop.f32.mrf.mxu0
    %v1522 = vadd.f32 %v1219, %v1521
    %v1523 = vpop.f32.mrf.mxu0
    %v1524 = vadd.f32 %v1215, %v1523
    %v1525 = vpop.f32.mrf.mxu0
    %v1526 = vadd.f32 %v1219, %v1525
    %1527 = vmatprep.mubr.bf16.mxu0 0
    %1528 = vmatmul.mubr.bf16.gmra.mxu0 %v1209
    %v1529 = vpop.f32.mrf.mxu0
    %v1530 = vadd.f32 %v1215, %v1529
    %v1531 = vpop.f32.mrf.mxu0
    %v1532 = vadd.f32 %v1219, %v1531
    %v1533 = vpop.f32.mrf.mxu0
    %v1534 = vadd.f32 %v1215, %v1533
    %v1535 = vpop.f32.mrf.mxu0
    %v1536 = vadd.f32 %v1219, %v1535
    %1537 = vmatprep.mubr.bf16.mxu0 0
    %1538 = vmatmul.mubr.bf16.gmra.mxu0 %v1210
    %v1539 = vpop.f32.mrf.mxu0
    %v1540 = vadd.f32 %v1215, %v1539
    %v1541 = vpop.f32.mrf.mxu0
    %v1542 = vadd.f32 %v1219, %v1541
    %v1543 = vpop.f32.mrf.mxu0
    %v1544 = vadd.f32 %v1215, %v1543
    %v1545 = vpop.f32.mrf.mxu0
    %v1546 = vadd.f32 %v1219, %v1545
    %1547 = vdwg.mxu0
    %1548 = vmatprep.subr.bf16.mxu0 0
    %1549 = vmatpush1.bf16.msra.mxu0 %v1330
    %1550 = vmatprep.subr.bf16.mxu0 0
    %1551 = vmatpush1.bf16.msra.mxu0 %v1327
    %1552 = vmatprep.subr.bf16.mxu0 0
    %1553 = vmatpush1.bf16.msra.mxu0 %v1324
    %1554 = vmatprep.subr.bf16.mxu0 0
    %1555 = vmatpush1.bf16.msra.mxu0 %v1321
    %1556 = vmatprep.subr.bf16.mxu0 0
    %1557 = vmatpush1.bf16.msra.mxu0 %v1318
    %1558 = vmatprep.subr.bf16.mxu0 0
    %1559 = vmatpush1.bf16.msra.mxu0 %v1315
    %1560 = vmatprep.subr.bf16.mxu0 0
    %1561 = vmatpush1.bf16.msra.mxu0 %v1312
    %1562 = vmatprep.subr.bf16.mxu0 0
    %1563 = vmatpush1.bf16.msra.mxu0 %v1309
    %1564 = vmatprep.subr.bf16.mxu0 0
    %1565 = vmatpush2.bf16.msra.mxu0 0
    %1566 = vmatprep.subr.bf16.mxu0 0
    %1567 = vmatpush2.bf16.msra.mxu0 0
    %1568 = vmatprep.subr.bf16.mxu0 0
    %1569 = vmatpush2.bf16.msra.mxu0 0
    %1570 = vmatprep.subr.bf16.mxu0 0
    %1571 = vmatpush2.bf16.msra.mxu0 0
    %1572 = vmatprep.subr.bf16.mxu0 0
    %1573 = vmatpush2.bf16.msra.mxu0 0
    %1574 = vmatprep.subr.bf16.mxu0 0
    %1575 = vmatpush2.bf16.msra.mxu0 0
    %1576 = vmatprep.subr.bf16.mxu0 0
    %1577 = vmatpush2.bf16.msra.mxu0 0
    %1578 = vmatprep.subr.bf16.mxu0 0
    %1579 = vmatpush2.bf16.msra.mxu0 0
    %1580 = vmatprep.mubr.bf16.mxu0 0
    %1581 = vmatmul.mubr.bf16.gmra.mxu0 %v1195
    %v1582 = vpop.f32.mrf.mxu0
    %v1583 = vadd.f32 %v1223, %v1582
    %v1584 = vpop.f32.mrf.mxu0
    %v1585 = vpop.f32.mrf.mxu0
    %v1586 = vadd.f32 %v1223, %v1585
    %v1587 = vpop.f32.mrf.mxu0
    %1588 = vmatprep.mubr.bf16.mxu0 0
    %1589 = vmatmul.mubr.bf16.gmra.mxu0 %v1196
    %v1590 = vpop.f32.mrf.mxu0
    %v1591 = vadd.f32 %v1223, %v1590
    %v1592 = vpop.f32.mrf.mxu0
    %v1593 = vpop.f32.mrf.mxu0
    %v1594 = vadd.f32 %v1223, %v1593
    %v1595 = vpop.f32.mrf.mxu0
    %1596 = vmatprep.mubr.bf16.mxu0 0
    %1597 = vmatmul.mubr.bf16.gmra.mxu0 %v1197
    %v1598 = vpop.f32.mrf.mxu0
    %v1599 = vadd.f32 %v1223, %v1598
    %v1600 = vpop.f32.mrf.mxu0
    %v1601 = vpop.f32.mrf.mxu0
    %v1602 = vadd.f32 %v1223, %v1601
    %v1603 = vpop.f32.mrf.mxu0
    %1604 = vmatprep.mubr.bf16.mxu0 0
    %1605 = vmatmul.mubr.bf16.gmra.mxu0 %v1198
    %v1606 = vpop.f32.mrf.mxu0
    %v1607 = vadd.f32 %v1223, %v1606
    %v1608 = vpop.f32.mrf.mxu0
    %v1609 = vpop.f32.mrf.mxu0
    %v1610 = vadd.f32 %v1223, %v1609
    %v1611 = vpop.f32.mrf.mxu0
    %1612 = vmatprep.mubr.bf16.mxu0 0
    %1613 = vmatmul.mubr.bf16.gmra.mxu0 %v1199
    %v1614 = vpop.f32.mrf.mxu0
    %v1615 = vadd.f32 %v1223, %v1614
    %v1616 = vpop.f32.mrf.mxu0
    %v1617 = vpop.f32.mrf.mxu0
    %v1618 = vadd.f32 %v1223, %v1617
    %v1619 = vpop.f32.mrf.mxu0
    %1620 = vmatprep.mubr.bf16.mxu0 0
    %1621 = vmatmul.mubr.bf16.gmra.mxu0 %v1200
    %v1622 = vpop.f32.mrf.mxu0
    %v1623 = vadd.f32 %v1223, %v1622
    %v1624 = vpop.f32.mrf.mxu0
    %v1625 = vpop.f32.mrf.mxu0
    %v1626 = vadd.f32 %v1223, %v1625
    %v1627 = vpop.f32.mrf.mxu0
    %1628 = vmatprep.mubr.bf16.mxu0 0
    %1629 = vmatmul.mubr.bf16.gmra.mxu0 %v1201
    %v1630 = vpop.f32.mrf.mxu0
    %v1631 = vadd.f32 %v1223, %v1630
    %v1632 = vpop.f32.mrf.mxu0
    %v1633 = vpop.f32.mrf.mxu0
    %v1634 = vadd.f32 %v1223, %v1633
    %v1635 = vpop.f32.mrf.mxu0
    %1636 = vmatprep.mubr.bf16.mxu0 0
    %1637 = vmatmul.mubr.bf16.gmra.mxu0 %v1202
    %v1638 = vpop.f32.mrf.mxu0
    %v1639 = vadd.f32 %v1223, %v1638
    %v1640 = vpop.f32.mrf.mxu0
    %v1641 = vpop.f32.mrf.mxu0
    %v1642 = vadd.f32 %v1223, %v1641
    %v1643 = vpop.f32.mrf.mxu0
    %1644 = vmatprep.mubr.bf16.mxu0 0
    %1645 = vmatmul.mubr.bf16.gmra.mxu0 %v1203
    %v1646 = vpop.f32.mrf.mxu0
    %v1647 = vadd.f32 %v1223, %v1646
    %v1648 = vpop.f32.mrf.mxu0
    %v1649 = vpop.f32.mrf.mxu0
    %v1650 = vadd.f32 %v1223, %v1649
    %v1651 = vpop.f32.mrf.mxu0
    %1652 = vmatprep.mubr.bf16.mxu0 0
    %1653 = vmatmul.mubr.bf16.gmra.mxu0 %v1204
    %v1654 = vpop.f32.mrf.mxu0
    %v1655 = vadd.f32 %v1223, %v1654
    %v1656 = vpop.f32.mrf.mxu0
    %v1657 = vpop.f32.mrf.mxu0
    %v1658 = vadd.f32 %v1223, %v1657
    %v1659 = vpop.f32.mrf.mxu0
    %1660 = vmatprep.mubr.bf16.mxu0 0
    %1661 = vmatmul.mubr.bf16.gmra.mxu0 %v1205
    %v1662 = vpop.f32.mrf.mxu0
    %v1663 = vadd.f32 %v1223, %v1662
    %v1664 = vpop.f32.mrf.mxu0
    %v1665 = vpop.f32.mrf.mxu0
    %v1666 = vadd.f32 %v1223, %v1665
    %v1667 = vpop.f32.mrf.mxu0
    %1668 = vmatprep.mubr.bf16.mxu0 0
    %1669 = vmatmul.mubr.bf16.gmra.mxu0 %v1206
    %v1670 = vpop.f32.mrf.mxu0
    %v1671 = vadd.f32 %v1223, %v1670
    %v1672 = vpop.f32.mrf.mxu0
    %v1673 = vpop.f32.mrf.mxu0
    %v1674 = vadd.f32 %v1223, %v1673
    %v1675 = vpop.f32.mrf.mxu0
    %1676 = vmatprep.mubr.bf16.mxu0 0
    %1677 = vmatmul.mubr.bf16.gmra.mxu0 %v1207
    %v1678 = vpop.f32.mrf.mxu0
    %v1679 = vadd.f32 %v1223, %v1678
    %v1680 = vpop.f32.mrf.mxu0
    %v1681 = vpop.f32.mrf.mxu0
    %v1682 = vadd.f32 %v1223, %v1681
    %v1683 = vpop.f32.mrf.mxu0
    %1684 = vmatprep.mubr.bf16.mxu0 0
    %1685 = vmatmul.mubr.bf16.gmra.mxu0 %v1208
    %v1686 = vpop.f32.mrf.mxu0
    %v1687 = vadd.f32 %v1223, %v1686
    %v1688 = vpop.f32.mrf.mxu0
    %v1689 = vpop.f32.mrf.mxu0
    %v1690 = vadd.f32 %v1223, %v1689
    %v1691 = vpop.f32.mrf.mxu0
    %1692 = vmatprep.mubr.bf16.mxu0 0
    %1693 = vmatmul.mubr.bf16.gmra.mxu0 %v1209
    %v1694 = vpop.f32.mrf.mxu0
    %v1695 = vadd.f32 %v1223, %v1694
    %v1696 = vpop.f32.mrf.mxu0
    %v1697 = vpop.f32.mrf.mxu0
    %v1698 = vadd.f32 %v1223, %v1697
    %v1699 = vpop.f32.mrf.mxu0
    %1700 = vmatprep.mubr.bf16.mxu0 0
    %1701 = vmatmul.mubr.bf16.gmra.mxu0 %v1210
    %v1702 = vpop.f32.mrf.mxu0
    %v1703 = vadd.f32 %v1223, %v1702
    %v1704 = vpop.f32.mrf.mxu0
    %v1705 = vpop.f32.mrf.mxu0
    %v1706 = vadd.f32 %v1223, %v1705
    %v1707 = vpop.f32.mrf.mxu0
    %1708 = vdwg.mxu0
    %v1709 = vxor.u32 %v1390, 2147483648
    %v1710 = vxor.u32 %v1394, 2147483648
    %v1711 = vxor.u32 %v1400, 2147483648
    %v1712 = vxor.u32 %v1404, 2147483648
    %v1713 = vxor.u32 %v1410, 2147483648
    %v1714 = vxor.u32 %v1414, 2147483648
    %v1715 = vxor.u32 %v1420, 2147483648
    %v1716 = vxor.u32 %v1424, 2147483648
    %v1717 = vxor.u32 %v1430, 2147483648
    %v1718 = vxor.u32 %v1434, 2147483648
    %v1719 = vxor.u32 %v1440, 2147483648
    %v1720 = vxor.u32 %v1444, 2147483648
    %v1721 = vxor.u32 %v1450, 2147483648
    %v1722 = vxor.u32 %v1454, 2147483648
    %v1723 = vxor.u32 %v1460, 2147483648
    %v1724 = vxor.u32 %v1464, 2147483648
    %v1725 = vxor.u32 %v1470, 2147483648
    %v1726 = vxor.u32 %v1474, 2147483648
    %v1727 = vxor.u32 %v1480, 2147483648
    %v1728 = vxor.u32 %v1484, 2147483648
    %v1729 = vxor.u32 %v1490, 2147483648
    %v1730 = vxor.u32 %v1494, 2147483648
    %v1731 = vxor.u32 %v1500, 2147483648
    %v1732 = vxor.u32 %v1504, 2147483648
    %v1733 = vxor.u32 %v1510, 2147483648
    %v1734 = vxor.u32 %v1514, 2147483648
    %v1735 = vxor.u32 %v1520, 2147483648
    %v1736 = vxor.u32 %v1524, 2147483648
    %v1737 = vxor.u32 %v1530, 2147483648
    %v1738 = vxor.u32 %v1534, 2147483648
    %v1739 = vxor.u32 %v1540, 2147483648
    %v1740 = vxor.u32 %v1544, 2147483648
    %v1741 = vmul.f32 %v1709, 1.442695
    %v1742 = vpow.pop %v1741
    %v1743 = vmul.f32 %v1710, 1.442695
    %v1744 = vpow.pop %v1743
    %v1745 = vmul.f32 %v1711, 1.442695
    %v1746 = vpow.pop %v1745
    %v1747 = vmul.f32 %v1712, 1.442695
    %v1748 = vpow.pop %v1747
    %v1749 = vmul.f32 %v1713, 1.442695
    %v1750 = vpow.pop %v1749
    %v1751 = vmul.f32 %v1714, 1.442695
    %v1752 = vpow.pop %v1751
    %v1753 = vmul.f32 %v1715, 1.442695
    %v1754 = vpow.pop %v1753
    %v1755 = vmul.f32 %v1716, 1.442695
    %v1756 = vpow.pop %v1755
    %v1757 = vmul.f32 %v1717, 1.442695
    %v1758 = vpow.pop %v1757
    %v1759 = vmul.f32 %v1718, 1.442695
    %v1760 = vpow.pop %v1759
    %v1761 = vmul.f32 %v1719, 1.442695
    %v1762 = vpow.pop %v1761
    %v1763 = vmul.f32 %v1720, 1.442695
    %v1764 = vpow.pop %v1763
    %v1765 = vmul.f32 %v1721, 1.442695
    %v1766 = vpow.pop %v1765
    %v1767 = vmul.f32 %v1722, 1.442695
    %v1768 = vpow.pop %v1767
    %v1769 = vmul.f32 %v1723, 1.442695
    %v1770 = vpow.pop %v1769
    %v1771 = vmul.f32 %v1724, 1.442695
    %v1772 = vpow.pop %v1771
    %v1773 = vmul.f32 %v1725, 1.442695
    %v1774 = vpow.pop %v1773
    %v1775 = vmul.f32 %v1726, 1.442695
    %v1776 = vpow.pop %v1775
    %v1777 = vmul.f32 %v1727, 1.442695
    %v1778 = vpow.pop %v1777
    %v1779 = vmul.f32 %v1728, 1.442695
    %v1780 = vpow.pop %v1779
    %v1781 = vmul.f32 %v1729, 1.442695
    %v1782 = vpow.pop %v1781
    %v1783 = vmul.f32 %v1730, 1.442695
    %v1784 = vpow.pop %v1783
    %v1785 = vmul.f32 %v1731, 1.442695
    %v1786 = vpow.pop %v1785
    %v1787 = vmul.f32 %v1732, 1.442695
    %v1788 = vpow.pop %v1787
    %v1789 = vmul.f32 %v1733, 1.442695
    %v1790 = vpow.pop %v1789
    %v1791 = vmul.f32 %v1734, 1.442695
    %v1792 = vpow.pop %v1791
    %v1793 = vmul.f32 %v1735, 1.442695
    %v1794 = vpow.pop %v1793
    %v1795 = vmul.f32 %v1736, 1.442695
    %v1796 = vpow.pop %v1795
    %v1797 = vmul.f32 %v1737, 1.442695
    %v1798 = vpow.pop %v1797
    %v1799 = vmul.f32 %v1738, 1.442695
    %v1800 = vpow.pop %v1799
    %v1801 = vmul.f32 %v1739, 1.442695
    %v1802 = vpow.pop %v1801
    %v1803 = vmul.f32 %v1740, 1.442695
    %v1804 = vpow.pop %v1803
    %v1805 = vadd.f32 %v1742, 1.0
    %v1806 = vadd.f32 %v1744, 1.0
    %v1807 = vadd.f32 %v1746, 1.0
    %v1808 = vadd.f32 %v1748, 1.0
    %v1809 = vadd.f32 %v1750, 1.0
    %v1810 = vadd.f32 %v1752, 1.0
    %v1811 = vadd.f32 %v1754, 1.0
    %v1812 = vadd.f32 %v1756, 1.0
    %v1813 = vadd.f32 %v1758, 1.0
    %v1814 = vadd.f32 %v1760, 1.0
    %v1815 = vadd.f32 %v1762, 1.0
    %v1816 = vadd.f32 %v1764, 1.0
    %v1817 = vadd.f32 %v1766, 1.0
    %v1818 = vadd.f32 %v1768, 1.0
    %v1819 = vadd.f32 %v1770, 1.0
    %v1820 = vadd.f32 %v1772, 1.0
    %v1821 = vadd.f32 %v1774, 1.0
    %v1822 = vadd.f32 %v1776, 1.0
    %v1823 = vadd.f32 %v1778, 1.0
    %v1824 = vadd.f32 %v1780, 1.0
    %v1825 = vadd.f32 %v1782, 1.0
    %v1826 = vadd.f32 %v1784, 1.0
    %v1827 = vadd.f32 %v1786, 1.0
    %v1828 = vadd.f32 %v1788, 1.0
    %v1829 = vadd.f32 %v1790, 1.0
    %v1830 = vadd.f32 %v1792, 1.0
    %v1831 = vadd.f32 %v1794, 1.0
    %v1832 = vadd.f32 %v1796, 1.0
    %v1833 = vadd.f32 %v1798, 1.0
    %v1834 = vadd.f32 %v1800, 1.0
    %v1835 = vadd.f32 %v1802, 1.0
    %v1836 = vadd.f32 %v1804, 1.0
    %v1837 = vrcp.pop %v1805
    %v1838 = vmul.f32 1.0, %v1837
    %v1839 = vrcp.pop %v1806
    %v1840 = vmul.f32 1.0, %v1839
    %v1841 = vrcp.pop %v1807
    %v1842 = vmul.f32 1.0, %v1841
    %v1843 = vrcp.pop %v1808
    %v1844 = vmul.f32 1.0, %v1843
    %v1845 = vrcp.pop %v1809
    %v1846 = vmul.f32 1.0, %v1845
    %v1847 = vrcp.pop %v1810
    %v1848 = vmul.f32 1.0, %v1847
    %v1849 = vrcp.pop %v1811
    %v1850 = vmul.f32 1.0, %v1849
    %v1851 = vrcp.pop %v1812
    %v1852 = vmul.f32 1.0, %v1851
    %v1853 = vrcp.pop %v1813
    %v1854 = vmul.f32 1.0, %v1853
    %v1855 = vrcp.pop %v1814
    %v1856 = vmul.f32 1.0, %v1855
    %v1857 = vrcp.pop %v1815
    %v1858 = vmul.f32 1.0, %v1857
    %v1859 = vrcp.pop %v1816
    %v1860 = vmul.f32 1.0, %v1859
    %v1861 = vrcp.pop %v1817
    %v1862 = vmul.f32 1.0, %v1861
    %v1863 = vrcp.pop %v1818
    %v1864 = vmul.f32 1.0, %v1863
    %v1865 = vrcp.pop %v1819
    %v1866 = vmul.f32 1.0, %v1865
    %v1867 = vrcp.pop %v1820
    %v1868 = vmul.f32 1.0, %v1867
    %v1869 = vrcp.pop %v1821
    %v1870 = vmul.f32 1.0, %v1869
    %v1871 = vrcp.pop %v1822
    %v1872 = vmul.f32 1.0, %v1871
    %v1873 = vrcp.pop %v1823
    %v1874 = vmul.f32 1.0, %v1873
    %v1875 = vrcp.pop %v1824
    %v1876 = vmul.f32 1.0, %v1875
    %v1877 = vrcp.pop %v1825
    %v1878 = vmul.f32 1.0, %v1877
    %v1879 = vrcp.pop %v1826
    %v1880 = vmul.f32 1.0, %v1879
    %v1881 = vrcp.pop %v1827
    %v1882 = vmul.f32 1.0, %v1881
    %v1883 = vrcp.pop %v1828
    %v1884 = vmul.f32 1.0, %v1883
    %v1885 = vrcp.pop %v1829
    %v1886 = vmul.f32 1.0, %v1885
    %v1887 = vrcp.pop %v1830
    %v1888 = vmul.f32 1.0, %v1887
    %v1889 = vrcp.pop %v1831
    %v1890 = vmul.f32 1.0, %v1889
    %v1891 = vrcp.pop %v1832
    %v1892 = vmul.f32 1.0, %v1891
    %v1893 = vrcp.pop %v1833
    %v1894 = vmul.f32 1.0, %v1893
    %v1895 = vrcp.pop %v1834
    %v1896 = vmul.f32 1.0, %v1895
    %v1897 = vrcp.pop %v1835
    %v1898 = vmul.f32 1.0, %v1897
    %v1899 = vrcp.pop %v1836
    %v1900 = vmul.f32 1.0, %v1899
    %v1901 = vtanh.pop %v1392
    %v1902 = vtanh.pop %v1396
    %v1903 = vtanh.pop %v1402
    %v1904 = vtanh.pop %v1406
    %v1905 = vtanh.pop %v1412
    %v1906 = vtanh.pop %v1416
    %v1907 = vtanh.pop %v1422
    %v1908 = vtanh.pop %v1426
    %v1909 = vtanh.pop %v1432
    %v1910 = vtanh.pop %v1436
    %v1911 = vtanh.pop %v1442
    %v1912 = vtanh.pop %v1446
    %v1913 = vtanh.pop %v1452
    %v1914 = vtanh.pop %v1456
    %v1915 = vtanh.pop %v1462
    %v1916 = vtanh.pop %v1466
    %v1917 = vtanh.pop %v1472
    %v1918 = vtanh.pop %v1476
    %v1919 = vtanh.pop %v1482
    %v1920 = vtanh.pop %v1486
    %v1921 = vtanh.pop %v1492
    %v1922 = vtanh.pop %v1496
    %v1923 = vtanh.pop %v1502
    %v1924 = vtanh.pop %v1506
    %v1925 = vtanh.pop %v1512
    %v1926 = vtanh.pop %v1516
    %v1927 = vtanh.pop %v1522
    %v1928 = vtanh.pop %v1526
    %v1929 = vtanh.pop %v1532
    %v1930 = vtanh.pop %v1536
    %v1931 = vtanh.pop %v1542
    %v1932 = vtanh.pop %v1546
    %v1933 = vxor.u32 %v1583, 2147483648
    %v1934 = vxor.u32 %v1586, 2147483648
    %v1935 = vxor.u32 %v1591, 2147483648
    %v1936 = vxor.u32 %v1594, 2147483648
    %v1937 = vxor.u32 %v1599, 2147483648
    %v1938 = vxor.u32 %v1602, 2147483648
    %v1939 = vxor.u32 %v1607, 2147483648
    %v1940 = vxor.u32 %v1610, 2147483648
    %v1941 = vxor.u32 %v1615, 2147483648
    %v1942 = vxor.u32 %v1618, 2147483648
    %v1943 = vxor.u32 %v1623, 2147483648
    %v1944 = vxor.u32 %v1626, 2147483648
    %v1945 = vxor.u32 %v1631, 2147483648
    %v1946 = vxor.u32 %v1634, 2147483648
    %v1947 = vxor.u32 %v1639, 2147483648
    %v1948 = vxor.u32 %v1642, 2147483648
    %v1949 = vxor.u32 %v1647, 2147483648
    %v1950 = vxor.u32 %v1650, 2147483648
    %v1951 = vxor.u32 %v1655, 2147483648
    %v1952 = vxor.u32 %v1658, 2147483648
    %v1953 = vxor.u32 %v1663, 2147483648
    %v1954 = vxor.u32 %v1666, 2147483648
    %v1955 = vxor.u32 %v1671, 2147483648
    %v1956 = vxor.u32 %v1674, 2147483648
    %v1957 = vxor.u32 %v1679, 2147483648
    %v1958 = vxor.u32 %v1682, 2147483648
    %v1959 = vxor.u32 %v1687, 2147483648
    %v1960 = vxor.u32 %v1690, 2147483648
    %v1961 = vxor.u32 %v1695, 2147483648
    %v1962 = vxor.u32 %v1698, 2147483648
    %v1963 = vxor.u32 %v1703, 2147483648
    %v1964 = vxor.u32 %v1706, 2147483648
    %v1965 = vmul.f32 %v1933, 1.442695
    %v1966 = vpow.pop %v1965
    %v1967 = vmul.f32 %v1934, 1.442695
    %v1968 = vpow.pop %v1967
    %v1969 = vmul.f32 %v1935, 1.442695
    %v1970 = vpow.pop %v1969
    %v1971 = vmul.f32 %v1936, 1.442695
    %v1972 = vpow.pop %v1971
    %v1973 = vmul.f32 %v1937, 1.442695
    %v1974 = vpow.pop %v1973
    %v1975 = vmul.f32 %v1938, 1.442695
    %v1976 = vpow.pop %v1975
    %v1977 = vmul.f32 %v1939, 1.442695
    %v1978 = vpow.pop %v1977
    %v1979 = vmul.f32 %v1940, 1.442695
    %v1980 = vpow.pop %v1979
    %v1981 = vmul.f32 %v1941, 1.442695
    %v1982 = vpow.pop %v1981
    %v1983 = vmul.f32 %v1942, 1.442695
    %v1984 = vpow.pop %v1983
    %v1985 = vmul.f32 %v1943, 1.442695
    %v1986 = vpow.pop %v1985
    %v1987 = vmul.f32 %v1944, 1.442695
    %v1988 = vpow.pop %v1987
    %v1989 = vmul.f32 %v1945, 1.442695
    %v1990 = vpow.pop %v1989
    %v1991 = vmul.f32 %v1946, 1.442695
    %v1992 = vpow.pop %v1991
    %v1993 = vmul.f32 %v1947, 1.442695
    %v1994 = vpow.pop %v1993
    %v1995 = vmul.f32 %v1948, 1.442695
    %v1996 = vpow.pop %v1995
    %v1997 = vmul.f32 %v1949, 1.442695
    %v1998 = vpow.pop %v1997
    %v1999 = vmul.f32 %v1950, 1.442695
    %v2000 = vpow.pop %v1999
    %v2001 = vmul.f32 %v1951, 1.442695
    %v2002 = vpow.pop %v2001
    %v2003 = vmul.f32 %v1952, 1.442695
    %v2004 = vpow.pop %v2003
    %v2005 = vmul.f32 %v1953, 1.442695
    %v2006 = vpow.pop %v2005
    %v2007 = vmul.f32 %v1954, 1.442695
    %v2008 = vpow.pop %v2007
    %v2009 = vmul.f32 %v1955, 1.442695
    %v2010 = vpow.pop %v2009
    %v2011 = vmul.f32 %v1956, 1.442695
    %v2012 = vpow.pop %v2011
    %v2013 = vmul.f32 %v1957, 1.442695
    %v2014 = vpow.pop %v2013
    %v2015 = vmul.f32 %v1958, 1.442695
    %v2016 = vpow.pop %v2015
    %v2017 = vmul.f32 %v1959, 1.442695
    %v2018 = vpow.pop %v2017
    %v2019 = vmul.f32 %v1960, 1.442695
    %v2020 = vpow.pop %v2019
    %v2021 = vmul.f32 %v1961, 1.442695
    %v2022 = vpow.pop %v2021
    %v2023 = vmul.f32 %v1962, 1.442695
    %v2024 = vpow.pop %v2023
    %v2025 = vmul.f32 %v1963, 1.442695
    %v2026 = vpow.pop %v2025
    %v2027 = vmul.f32 %v1964, 1.442695
    %v2028 = vpow.pop %v2027
    %v2029 = vadd.f32 %v1966, 1.0
    %v2030 = vadd.f32 %v1968, 1.0
    %v2031 = vadd.f32 %v1970, 1.0
    %v2032 = vadd.f32 %v1972, 1.0
    %v2033 = vadd.f32 %v1974, 1.0
    %v2034 = vadd.f32 %v1976, 1.0
    %v2035 = vadd.f32 %v1978, 1.0
    %v2036 = vadd.f32 %v1980, 1.0
    %v2037 = vadd.f32 %v1982, 1.0
    %v2038 = vadd.f32 %v1984, 1.0
    %v2039 = vadd.f32 %v1986, 1.0
    %v2040 = vadd.f32 %v1988, 1.0
    %v2041 = vadd.f32 %v1990, 1.0
    %v2042 = vadd.f32 %v1992, 1.0
    %v2043 = vadd.f32 %v1994, 1.0
    %v2044 = vadd.f32 %v1996, 1.0
    %v2045 = vadd.f32 %v1998, 1.0
    %v2046 = vadd.f32 %v2000, 1.0
    %v2047 = vadd.f32 %v2002, 1.0
    %v2048 = vadd.f32 %v2004, 1.0
    %v2049 = vadd.f32 %v2006, 1.0
    %v2050 = vadd.f32 %v2008, 1.0
    %v2051 = vadd.f32 %v2010, 1.0
    %v2052 = vadd.f32 %v2012, 1.0
    %v2053 = vadd.f32 %v2014, 1.0
    %v2054 = vadd.f32 %v2016, 1.0
    %v2055 = vadd.f32 %v2018, 1.0
    %v2056 = vadd.f32 %v2020, 1.0
    %v2057 = vadd.f32 %v2022, 1.0
    %v2058 = vadd.f32 %v2024, 1.0
    %v2059 = vadd.f32 %v2026, 1.0
    %v2060 = vadd.f32 %v2028, 1.0
    %v2061 = vrcp.pop %v2029
    %v2062 = vmul.f32 1.0, %v2061
    %v2063 = vrcp.pop %v2030
    %v2064 = vmul.f32 1.0, %v2063
    %v2065 = vrcp.pop %v2031
    %v2066 = vmul.f32 1.0, %v2065
    %v2067 = vrcp.pop %v2032
    %v2068 = vmul.f32 1.0, %v2067
    %v2069 = vrcp.pop %v2033
    %v2070 = vmul.f32 1.0, %v2069
    %v2071 = vrcp.pop %v2034
    %v2072 = vmul.f32 1.0, %v2071
    %v2073 = vrcp.pop %v2035
    %v2074 = vmul.f32 1.0, %v2073
    %v2075 = vrcp.pop %v2036
    %v2076 = vmul.f32 1.0, %v2075
    %v2077 = vrcp.pop %v2037
    %v2078 = vmul.f32 1.0, %v2077
    %v2079 = vrcp.pop %v2038
    %v2080 = vmul.f32 1.0, %v2079
    %v2081 = vrcp.pop %v2039
    %v2082 = vmul.f32 1.0, %v2081
    %v2083 = vrcp.pop %v2040
    %v2084 = vmul.f32 1.0, %v2083
    %v2085 = vrcp.pop %v2041
    %v2086 = vmul.f32 1.0, %v2085
    %v2087 = vrcp.pop %v2042
    %v2088 = vmul.f32 1.0, %v2087
    %v2089 = vrcp.pop %v2043
    %v2090 = vmul.f32 1.0, %v2089
    %v2091 = vrcp.pop %v2044
    %v2092 = vmul.f32 1.0, %v2091
    %v2093 = vrcp.pop %v2045
    %v2094 = vmul.f32 1.0, %v2093
    %v2095 = vrcp.pop %v2046
    %v2096 = vmul.f32 1.0, %v2095
    %v2097 = vrcp.pop %v2047
    %v2098 = vmul.f32 1.0, %v2097
    %v2099 = vrcp.pop %v2048
    %v2100 = vmul.f32 1.0, %v2099
    %v2101 = vrcp.pop %v2049
    %v2102 = vmul.f32 1.0, %v2101
    %v2103 = vrcp.pop %v2050
    %v2104 = vmul.f32 1.0, %v2103
    %v2105 = vrcp.pop %v2051
    %v2106 = vmul.f32 1.0, %v2105
    %v2107 = vrcp.pop %v2052
    %v2108 = vmul.f32 1.0, %v2107
    %v2109 = vrcp.pop %v2053
    %v2110 = vmul.f32 1.0, %v2109
    %v2111 = vrcp.pop %v2054
    %v2112 = vmul.f32 1.0, %v2111
    %v2113 = vrcp.pop %v2055
    %v2114 = vmul.f32 1.0, %v2113
    %v2115 = vrcp.pop %v2056
    %v2116 = vmul.f32 1.0, %v2115
    %v2117 = vrcp.pop %v2057
    %v2118 = vmul.f32 1.0, %v2117
    %v2119 = vrcp.pop %v2058
    %v2120 = vmul.f32 1.0, %v2119
    %v2121 = vrcp.pop %v2059
    %v2122 = vmul.f32 1.0, %v2121
    %v2123 = vrcp.pop %v2060
    %v2124 = vmul.f32 1.0, %v2123
    %v2125 = vmul.f32 %v1838, %v1901
    %v2126 = vmul.f32 %v1840, %v1902
    %v2127 = vmul.f32 %v1842, %v1903
    %v2128 = vmul.f32 %v1844, %v1904
    %v2129 = vmul.f32 %v1846, %v1905
    %v2130 = vmul.f32 %v1848, %v1906
    %v2131 = vmul.f32 %v1850, %v1907
    %v2132 = vmul.f32 %v1852, %v1908
    %v2133 = vmul.f32 %v1854, %v1909
    %v2134 = vmul.f32 %v1856, %v1910
    %v2135 = vmul.f32 %v1858, %v1911
    %v2136 = vmul.f32 %v1860, %v1912
    %v2137 = vmul.f32 %v1862, %v1913
    %v2138 = vmul.f32 %v1864, %v1914
    %v2139 = vmul.f32 %v1866, %v1915
    %v2140 = vmul.f32 %v1868, %v1916
    %v2141 = vmul.f32 %v1870, %v1917
    %v2142 = vmul.f32 %v1872, %v1918
    %v2143 = vmul.f32 %v1874, %v1919
    %v2144 = vmul.f32 %v1876, %v1920
    %v2145 = vmul.f32 %v1878, %v1921
    %v2146 = vmul.f32 %v1880, %v1922
    %v2147 = vmul.f32 %v1882, %v1923
    %v2148 = vmul.f32 %v1884, %v1924
    %v2149 = vmul.f32 %v1886, %v1925
    %v2150 = vmul.f32 %v1888, %v1926
    %v2151 = vmul.f32 %v1890, %v1927
    %v2152 = vmul.f32 %v1892, %v1928
    %v2153 = vmul.f32 %v1894, %v1929
    %v2154 = vmul.f32 %v1896, %v1930
    %v2155 = vmul.f32 %v1898, %v1931
    %v2156 = vmul.f32 %v1900, %v1932
    %v2157 = vtanh.pop %v2125
    %v2158 = vtanh.pop %v2126
    %v2159 = vtanh.pop %v2127
    %v2160 = vtanh.pop %v2128
    %v2161 = vtanh.pop %v2129
    %v2162 = vtanh.pop %v2130
    %v2163 = vtanh.pop %v2131
    %v2164 = vtanh.pop %v2132
    %v2165 = vtanh.pop %v2133
    %v2166 = vtanh.pop %v2134
    %v2167 = vtanh.pop %v2135
    %v2168 = vtanh.pop %v2136
    %v2169 = vtanh.pop %v2137
    %v2170 = vtanh.pop %v2138
    %v2171 = vtanh.pop %v2139
    %v2172 = vtanh.pop %v2140
    %v2173 = vtanh.pop %v2141
    %v2174 = vtanh.pop %v2142
    %v2175 = vtanh.pop %v2143
    %v2176 = vtanh.pop %v2144
    %v2177 = vtanh.pop %v2145
    %v2178 = vtanh.pop %v2146
    %v2179 = vtanh.pop %v2147
    %v2180 = vtanh.pop %v2148
    %v2181 = vtanh.pop %v2149
    %v2182 = vtanh.pop %v2150
    %v2183 = vtanh.pop %v2151
    %v2184 = vtanh.pop %v2152
    %v2185 = vtanh.pop %v2153
    %v2186 = vtanh.pop %v2154
    %v2187 = vtanh.pop %v2155
    %v2188 = vtanh.pop %v2156
    %v2189 = vmul.f32 %v2062, %v2157
    %v2190 = vmul.f32 %v2064, %v2158
    %v2191 = vmul.f32 %v2066, %v2159
    %v2192 = vmul.f32 %v2068, %v2160
    %v2193 = vmul.f32 %v2070, %v2161
    %v2194 = vmul.f32 %v2072, %v2162
    %v2195 = vmul.f32 %v2074, %v2163
    %v2196 = vmul.f32 %v2076, %v2164
    %v2197 = vmul.f32 %v2078, %v2165
    %v2198 = vmul.f32 %v2080, %v2166
    %v2199 = vmul.f32 %v2082, %v2167
    %v2200 = vmul.f32 %v2084, %v2168
    %v2201 = vmul.f32 %v2086, %v2169
    %v2202 = vmul.f32 %v2088, %v2170
    %v2203 = vmul.f32 %v2090, %v2171
    %v2204 = vmul.f32 %v2092, %v2172
    %v2205 = vmul.f32 %v2094, %v2173
    %v2206 = vmul.f32 %v2096, %v2174
    %v2207 = vmul.f32 %v2098, %v2175
    %v2208 = vmul.f32 %v2100, %v2176
    %v2209 = vmul.f32 %v2102, %v2177
    %v2210 = vmul.f32 %v2104, %v2178
    %v2211 = vmul.f32 %v2106, %v2179
    %v2212 = vmul.f32 %v2108, %v2180
    %v2213 = vmul.f32 %v2110, %v2181
    %v2214 = vmul.f32 %v2112, %v2182
    %v2215 = vmul.f32 %v2114, %v2183
    %v2216 = vmul.f32 %v2116, %v2184
    %v2217 = vmul.f32 %v2118, %v2185
    %v2218 = vmul.f32 %v2120, %v2186
    %v2219 = vmul.f32 %v2122, %v2187
    %v2220 = vmul.f32 %v2124, %v2188
    %v2221 = vld [vmem:[%s5] sm:$0x1]
    %v2223 = vlaneseq
    %v2224 = vshrl.u32 %v2223, 7
    %v2225 = vsub.s32 0, %v2224
    %v2226 = vrot.slane %v2221, %v2225
    %v2228 = vmul.f32 %v2189, %v2226
    %v2229 = vmul.f32 %v2190, %v2226
    %v2230 = vmul.f32 %v2191, %v2226
    %v2231 = vmul.f32 %v2192, %v2226
    %v2232 = vmul.f32 %v2193, %v2226
    %v2233 = vmul.f32 %v2194, %v2226
    %v2234 = vmul.f32 %v2195, %v2226
    %v2235 = vmul.f32 %v2196, %v2226
    %v2236 = vmul.f32 %v2197, %v2226
    %v2237 = vmul.f32 %v2198, %v2226
    %v2238 = vmul.f32 %v2199, %v2226
    %v2239 = vmul.f32 %v2200, %v2226
    %v2240 = vmul.f32 %v2201, %v2226
    %v2241 = vmul.f32 %v2202, %v2226
    %v2242 = vmul.f32 %v2203, %v2226
    %v2243 = vmul.f32 %v2204, %v2226
    %v2244 = vmul.f32 %v2205, %v2226
    %v2245 = vmul.f32 %v2206, %v2226
    %v2246 = vmul.f32 %v2207, %v2226
    %v2247 = vmul.f32 %v2208, %v2226
    %v2248 = vmul.f32 %v2209, %v2226
    %v2249 = vmul.f32 %v2210, %v2226
    %v2250 = vmul.f32 %v2211, %v2226
    %v2251 = vmul.f32 %v2212, %v2226
    %v2252 = vmul.f32 %v2213, %v2226
    %v2253 = vmul.f32 %v2214, %v2226
    %v2254 = vmul.f32 %v2215, %v2226
    %v2255 = vmul.f32 %v2216, %v2226
    %v2256 = vmul.f32 %v2217, %v2226
    %v2257 = vmul.f32 %v2218, %v2226
    %v2258 = vmul.f32 %v2219, %v2226
    %v2259 = vmul.f32 %v2220, %v2226
    %2260 = vadd.xlane.f32.xlu0 %v2228
    %v2261 = vpop.xlane.xlu0 %2260
    %2262 = vadd.xlane.f32.xlu0 %v2229
    %v2263 = vpop.xlane.xlu0 %2262
    %2264 = vadd.xlane.f32.xlu0 %v2230
    %v2265 = vpop.xlane.xlu0 %2264
    %2266 = vadd.xlane.f32.xlu0 %v2231
    %v2267 = vpop.xlane.xlu0 %2266
    %2268 = vadd.xlane.f32.xlu0 %v2232
    %v2269 = vpop.xlane.xlu0 %2268
    %2270 = vadd.xlane.f32.xlu0 %v2233
    %v2271 = vpop.xlane.xlu0 %2270
    %2272 = vadd.xlane.f32.xlu0 %v2234
    %v2273 = vpop.xlane.xlu0 %2272
    %2274 = vadd.xlane.f32.xlu0 %v2235
    %v2275 = vpop.xlane.xlu0 %2274
    %2276 = vadd.xlane.f32.xlu0 %v2236
    %v2277 = vpop.xlane.xlu0 %2276
    %2278 = vadd.xlane.f32.xlu0 %v2237
    %v2279 = vpop.xlane.xlu0 %2278
    %2280 = vadd.xlane.f32.xlu0 %v2238
    %v2281 = vpop.xlane.xlu0 %2280
    %2282 = vadd.xlane.f32.xlu0 %v2239
    %v2283 = vpop.xlane.xlu0 %2282
    %2284 = vadd.xlane.f32.xlu0 %v2240
    %v2285 = vpop.xlane.xlu0 %2284
    %2286 = vadd.xlane.f32.xlu0 %v2241
    %v2287 = vpop.xlane.xlu0 %2286
    %2288 = vadd.xlane.f32.xlu0 %v2242
    %v2289 = vpop.xlane.xlu0 %2288
    %2290 = vadd.xlane.f32.xlu0 %v2243
    %v2291 = vpop.xlane.xlu0 %2290
    %2292 = vadd.xlane.f32.xlu0 %v2244
    %v2293 = vpop.xlane.xlu0 %2292
    %2294 = vadd.xlane.f32.xlu0 %v2245
    %v2295 = vpop.xlane.xlu0 %2294
    %2296 = vadd.xlane.f32.xlu0 %v2246
    %v2297 = vpop.xlane.xlu0 %2296
    %2298 = vadd.xlane.f32.xlu0 %v2247
    %v2299 = vpop.xlane.xlu0 %2298
    %2300 = vadd.xlane.f32.xlu0 %v2248
    %v2301 = vpop.xlane.xlu0 %2300
    %2302 = vadd.xlane.f32.xlu0 %v2249
    %v2303 = vpop.xlane.xlu0 %2302
    %2304 = vadd.xlane.f32.xlu0 %v2250
    %v2305 = vpop.xlane.xlu0 %2304
    %2306 = vadd.xlane.f32.xlu0 %v2251
    %v2307 = vpop.xlane.xlu0 %2306
    %2308 = vadd.xlane.f32.xlu0 %v2252
    %v2309 = vpop.xlane.xlu0 %2308
    %2310 = vadd.xlane.f32.xlu0 %v2253
    %v2311 = vpop.xlane.xlu0 %2310
    %2312 = vadd.xlane.f32.xlu0 %v2254
    %v2313 = vpop.xlane.xlu0 %2312
    %2314 = vadd.xlane.f32.xlu0 %v2255
    %v2315 = vpop.xlane.xlu0 %2314
    %2316 = vadd.xlane.f32.xlu0 %v2256
    %v2317 = vpop.xlane.xlu0 %2316
    %2318 = vadd.xlane.f32.xlu0 %v2257
    %v2319 = vpop.xlane.xlu0 %2318
    %2320 = vadd.xlane.f32.xlu0 %v2258
    %v2321 = vpop.xlane.xlu0 %2320
    %2322 = vadd.xlane.f32.xlu0 %v2259
    %v2323 = vpop.xlane.xlu0 %2322
    %v2324 = vld [vmem:[#allocation2] sm:$0x1]
    %v2326 = vlaneseq
    %v2327 = vshrl.u32 %v2326, 7
    %v2328 = vsub.s32 0, %v2327
    %v2329 = vrot.slane %v2324, %v2328
    %v2331 = vadd.f32 %v2261, %v2329
    %v2332 = vadd.f32 %v2263, %v2329
    %v2333 = vadd.f32 %v2265, %v2329
    %v2334 = vadd.f32 %v2267, %v2329
    %v2335 = vadd.f32 %v2269, %v2329
    %v2336 = vadd.f32 %v2271, %v2329
    %v2337 = vadd.f32 %v2273, %v2329
    %v2338 = vadd.f32 %v2275, %v2329
    %v2339 = vadd.f32 %v2277, %v2329
    %v2340 = vadd.f32 %v2279, %v2329
    %v2341 = vadd.f32 %v2281, %v2329
    %v2342 = vadd.f32 %v2283, %v2329
    %v2343 = vadd.f32 %v2285, %v2329
    %v2344 = vadd.f32 %v2287, %v2329
    %v2345 = vadd.f32 %v2289, %v2329
    %v2346 = vadd.f32 %v2291, %v2329
    %v2347 = vadd.f32 %v2293, %v2329
    %v2348 = vadd.f32 %v2295, %v2329
    %v2349 = vadd.f32 %v2297, %v2329
    %v2350 = vadd.f32 %v2299, %v2329
    %v2351 = vadd.f32 %v2301, %v2329
    %v2352 = vadd.f32 %v2303, %v2329
    %v2353 = vadd.f32 %v2305, %v2329
    %v2354 = vadd.f32 %v2307, %v2329
    %v2355 = vadd.f32 %v2309, %v2329
    %v2356 = vadd.f32 %v2311, %v2329
    %v2357 = vadd.f32 %v2313, %v2329
    %v2358 = vadd.f32 %v2315, %v2329
    %v2359 = vadd.f32 %v2317, %v2329
    %v2360 = vadd.f32 %v2319, %v2329
    %v2361 = vadd.f32 %v2321, %v2329
    %v2362 = vadd.f32 %v2323, %v2329
    %2363 = vxpose.xlu0.b32.start [1/16] %v2331, 128
    %2364 = vxpose.xlu0.b32.cont [2/16] %v2332, 128
    %2365 = vxpose.xlu0.b32.cont [3/16] %v2333, 128
    %2366 = vxpose.xlu0.b32.cont [4/16] %v2334, 128
    %2367 = vxpose.xlu0.b32.cont [5/16] %v2335, 128
    %2368 = vxpose.xlu0.b32.cont [6/16] %v2336, 128
    %2369 = vxpose.xlu0.b32.cont [7/16] %v2337, 128
    %2370 = vxpose.xlu0.b32.cont [8/16] %v2338, 128
    %2371 = vxpose.xlu0.b32.cont [9/16] %v2339, 128
    %2372 = vxpose.xlu0.b32.cont [10/16] %v2340, 128
    %2373 = vxpose.xlu0.b32.cont [11/16] %v2341, 128
    %2374 = vxpose.xlu0.b32.cont [12/16] %v2342, 128
    %2375 = vxpose.xlu0.b32.cont [13/16] %v2343, 128
    %2376 = vxpose.xlu0.b32.cont [14/16] %v2344, 128
    %2377 = vxpose.xlu0.b32.cont [15/16] %v2345, 128
    %2378 = vxpose.xlu0.b32.end [16/16] %v2346, 128
    %v2379 = vpop.trf.xlu0
    %v2380 = vpop.trf.xlu0
    %v2381 = vpop.trf.xlu0
    %v2382 = vpop.trf.xlu0
    %v2383 = vpop.trf.xlu0
    %v2384 = vpop.trf.xlu0
    %v2385 = vpop.trf.xlu0
    %v2386 = vpop.trf.xlu0
    %v2387 = vpop.trf.xlu0
    %v2388 = vpop.trf.xlu0
    %v2389 = vpop.trf.xlu0
    %v2390 = vpop.trf.xlu0
    %v2391 = vpop.trf.xlu0
    %v2392 = vpop.trf.xlu0
    %v2393 = vpop.trf.xlu0
    %v2394 = vpop.trf.xlu0
    %2395 = vxpose.xlu0.b32.start [1/16] %v2347, 128
    %2396 = vxpose.xlu0.b32.cont [2/16] %v2348, 128
    %2397 = vxpose.xlu0.b32.cont [3/16] %v2349, 128
    %2398 = vxpose.xlu0.b32.cont [4/16] %v2350, 128
    %2399 = vxpose.xlu0.b32.cont [5/16] %v2351, 128
    %2400 = vxpose.xlu0.b32.cont [6/16] %v2352, 128
    %2401 = vxpose.xlu0.b32.cont [7/16] %v2353, 128
    %2402 = vxpose.xlu0.b32.cont [8/16] %v2354, 128
    %2403 = vxpose.xlu0.b32.cont [9/16] %v2355, 128
    %2404 = vxpose.xlu0.b32.cont [10/16] %v2356, 128
    %2405 = vxpose.xlu0.b32.cont [11/16] %v2357, 128
    %2406 = vxpose.xlu0.b32.cont [12/16] %v2358, 128
    %2407 = vxpose.xlu0.b32.cont [13/16] %v2359, 128
    %2408 = vxpose.xlu0.b32.cont [14/16] %v2360, 128
    %2409 = vxpose.xlu0.b32.cont [15/16] %v2361, 128
    %2410 = vxpose.xlu0.b32.end [16/16] %v2362, 128
    %v2411 = vpop.trf.xlu0
    %v2412 = vpop.trf.xlu0
    %v2413 = vpop.trf.xlu0
    %v2414 = vpop.trf.xlu0
    %v2415 = vpop.trf.xlu0
    %v2416 = vpop.trf.xlu0
    %v2417 = vpop.trf.xlu0
    %v2418 = vpop.trf.xlu0
    %v2419 = vpop.trf.xlu0
    %v2420 = vpop.trf.xlu0
    %v2421 = vpop.trf.xlu0
    %v2422 = vpop.trf.xlu0
    %v2423 = vpop.trf.xlu0
    %v2424 = vpop.trf.xlu0
    %v2425 = vpop.trf.xlu0
    %v2426 = vpop.trf.xlu0
    %v2429 = vcombine.low %v2379, %v2411
    %v2431 = vunpack.c.l.s4 1966171168
    %v2432 = vunpack.c.0.s8 %v2431
    %v2433 = vlaneseq
    %v2434 = vshrl.u32 %v2433, 7
    %v2435 = vsub.s32 %v2432, %v2434
    %v2436 = vrot.slane %v2429, %v2435
    %v2438 = vunpack.c.l.s4 1966171168
    %v2439 = vunpack.c.0.s8 %v2438
    %v2440 = vlaneseq
    %v2441 = vshrl.u32 %v2440, 7
    %v2442 = vsub.s32 %v2439, %v2441
    %v2443 = vrot.slane %v2436, %v2442
    %v2445 = vlaneseq
    %vm2446 = vcmp.ge.s32.totalorder %v2445, 0
    %vm2447 = vcmp.lt.s32.totalorder %v2445, 256
    %vm2448 = vmand %vm2446, %vm2447
    %2449 = vst.msk [vmem:[#allocation9] sm:$0x3] %vm2448, %v2443
    // Predicated region
    $region42: #{tpu_custom_call.1} parent=1 // pred_check
      _
    $region43: #{tpu_custom_call.1} parent=1 // pred_check_branch
      %2451 = sbr.rel (0) target = $region45
    $region44: #{tpu_custom_call.1} parent=1 // pred_region
      %s2453 = ssub.s32 32, 32
      %2454 = vsyncadd [#allocation5], %s2453
      %s2456 = sshll.u32 [#allocation9], 4
      %s2457 = int_to_ptr.vmem [resolvable:$true] %s2456
      %2459 = dma.vmem_to_hbm [thread:$0]  %s2457, 32, %s7, [#allocation5]
    $region45: #{tpu_custom_call.1} parent=1 // pred_fallthru
      _
    // Predicated region
    $region46: #{tpu_custom_call.1} parent=1 // pred_check
      _
    $region47: #{tpu_custom_call.1} parent=1 // pred_check_branch
      %2461 = sbr.rel (0) target = $region49
    $region48: #{tpu_custom_call.1} parent=1 // pred_region
      %2462 = dma.done [#allocation5], 32
    $region49: #{tpu_custom_call.1} parent=1 // pred_fallthru
      _
    %2463 = vsyncpa [#allocation4], 1
    %2464 = vsyncpa [#allocation7], 1
    %2465 = vsyncpa [#allocation5], 1

</llo_original>
